<compile_context>
chip_gen: v7x
topology: tpu7x:2x2x1
jax: 0.10.0
libtpu: 0.0.40
codegen_flags: <defaults>
</compile_context>

<pallas_src>
import jax
import jax.numpy as jnp
from jax.experimental import pallas as pl
from jax.experimental.pallas import tpu as pltpu


def _attention_unit_kernel(x_ref, sproj_ref, wx_ref, ww_ref, o_ref):
    # Per-grid-step shapes:
    #   x_ref    : (Bt*T, xDim)   -- Bt batch rows flattened with T (f32 or bf16)
    #   sproj_ref: (Bt, attDim)   -- precomputed sEmbed(sPrev) + bs + bx (f32)
    #   wx_ref   : (xDim, attDim) -- xEmbed weight (transposed), resident
    #   ww_ref   : (1, attDim)    -- wEmbed weight, resident (f32)
    #   o_ref    : (Bt, T)        -- alpha
    bt, t = o_ref.shape
    att = wx_ref.shape[1]

    # xProj = xEmbed(x): one MXU matmul with M = Bt*T rows, f32 accumulate.
    x_proj = jnp.dot(x_ref[...], wx_ref[...],
                     preferred_element_type=jnp.float32)           # (Bt*T, att)
    x_proj = x_proj.reshape(bt, t, att)                            # (Bt, T, att)

    # sumTanh = tanh(sProj + xProj); sProj already carries bs + bx.
    # TODO(synk): on v6e/v7x the tanh + weighted reduction could run in bf16
    # (bf16 VPU/EUP) to halve elementwise/transcendental work; kept f32 here
    # for portability (v5e has no bf16 VPU/EUP) and accuracy.
    sum_tanh = jnp.tanh(x_proj + sproj_ref[...].reshape(bt, 1, att))

    # vProj = wEmbed(sumTanh) without its bias (a constant offset cancels in
    # the softmax over T): weighted lane-reduction over attDim -> (Bt, T).
    v = jnp.sum(sum_tanh * ww_ref[...], axis=-1)                   # (Bt, T)

    # alpha = softmax(v, axis=T), numerically stable.  Approx EUP reciprocal
    # plus one Newton step gives near-exact normalisation.
    m = jnp.max(v, axis=-1, keepdims=True)                         # (Bt, 1)
    e = jnp.exp(v - m)                                             # (Bt, T)
    denom = jnp.sum(e, axis=-1, keepdims=True)                     # (Bt, 1)
    r = pl.reciprocal(denom, approx=True)
    r = r * (2.0 - denom * r)                                      # Newton refine
    o_ref[...] = (e * r).astype(o_ref.dtype)                       # (Bt, T)


def _pick_block_b(B, T, xDim, itemsize, *, target_bytes=1 << 20, min_steps=8):
    """Batch rows per grid step.

    Constraints / goals:
      * block_b divides B exactly (no padding of x) and is a multiple of 8
        (sublane constraint), unless it is the whole batch.
      * ~1 MiB of x per step (block_b*T*xDim*itemsize) so the ~0.35us per-step
        overhead is amortised and the x DMA runs near HBM roofline.
      * keep >= min_steps grid steps when B allows, so v7x's 2 TensorCores each
        get several steps and DMA overlaps with compute.
    """
    if B % 8 != 0:
        # TODO(synk): ragged batches use a single whole-batch block; a masked
        # tail block would be needed for very large B that is not a multiple of 8.
        return B
    ideal = max(8, target_bytes // (T * xDim * itemsize))
    divisors = [d for d in range(8, B + 1, 8) if B % d == 0]
    # Largest divisor within the traffic target that still leaves enough steps.
    for d in sorted(divisors, reverse=True):
        if d <= ideal and B // d >= min_steps:
            return d
    # Otherwise: largest divisor within the traffic target (few steps, but the
    # whole problem is small enough that amortisation dominates).
    for d in sorted(divisors, reverse=True):
        if d <= ideal:
            return d
    return 8  # unreachable (8 always divides B here and ideal >= 8)


def attention_unit(x, s_prev, params, *, block_b=None):
    """x: (B, T, xDim) f32/bf16; s_prev: (1, B, sDim) -> alpha: (B, T) f32."""
    B, T, xDim = x.shape
    sDim, attDim = params["ws"].shape

    # Hoisted out of the kernel: sEmbed projection with both additive input
    # biases folded in.  bw (wEmbed bias) is dropped -- it cancels in softmax.
    s = s_prev.reshape(B, sDim).astype(jnp.float32)
    s_proj = (s @ params["ws"] + params["bs"] + params["bx"]).astype(jnp.float32)

    itemsize_x = jnp.dtype(x.dtype).itemsize
    if block_b is None:
        block_b = _pick_block_b(B, T, xDim, itemsize_x)
    assert B % block_b == 0, f"block_b={block_b} must divide B={B}"
    assert block_b % 8 == 0 or block_b == B, \
        f"block_b={block_b} must be a multiple of 8 or the whole batch"
    grid_b = B // block_b
    block_rows = block_b * T

    # Weights follow x's dtype for the MXU matmul (tiny arrays, cheap cast);
    # x itself is NOT cast in the wrapper (would add a full HBM pass over x).
    wx = params["wx"].astype(x.dtype)
    ww = params["ww"].astype(jnp.float32)

    x2d = x.reshape(B * T, xDim)   # contiguous collapse -> free in XLA

    # VMEM budget: double-buffered x / sProj / out blocks + resident weights
    # + the two f32 intermediates (x_proj, sum_tanh).  Sized to fit v7x (64 MiB).
    vmem_est = (2 * block_rows * xDim * itemsize_x
                + 2 * block_b * attDim * 4
                + 2 * (xDim * attDim * itemsize_x + attDim * 4)
                + 2 * block_b * T * 4
                + 2 * block_rows * attDim * 4)
    vmem_limit = int(min(max(2 * vmem_est, 32 << 20), 56 << 20))

    cost = pl.CostEstimate(
        flops=2 * B * T * xDim * attDim + 3 * B * T * attDim + 4 * B * T,
        transcendentals=B * T * attDim + B * T,
        bytes_accessed=(x2d.size * itemsize_x + s_proj.size * 4
                        + wx.size * itemsize_x + ww.size * 4 + B * T * 4),
    )

    out = pl.pallas_call(
        _attention_unit_kernel,
        out_shape=jax.ShapeDtypeStruct((B, T), jnp.float32),
        grid_spec=pltpu.PrefetchScalarGridSpec(
            num_scalar_prefetch=0,
            grid=(grid_b,),
            in_specs=[
                pl.BlockSpec((block_rows, xDim), lambda b: (b, 0)),   # x (flattened)
                pl.BlockSpec((block_b, attDim), lambda b: (b, 0)),    # sProj (+biases)
                pl.BlockSpec((xDim, attDim), lambda b: (0, 0)),       # xEmbed.W^T
                pl.BlockSpec((1, attDim), lambda b: (0, 0)),          # wEmbed.W
            ],
            # TODO(synk): a lane-dense (1, block_b*T) output store would avoid
            # the T=8 masked vst; it needs an in-kernel sublane->lane relayout
            # of the (Bt, T) softmax result, skipped here for lowering safety
            # (output is only ~6% of HBM bytes).
            out_specs=pl.BlockSpec((block_b, T), lambda b: (b, 0)),
        ),
        compiler_params=pltpu.CompilerParams(
            dimension_semantics=("parallel",),
            vmem_limit_bytes=vmem_limit),
        cost_estimate=cost,
    )(x2d, s_proj, wx, ww)
    return out                                                      # (B, T)


def attention_unit_ref(x, s_prev, params):
    """Pure-JAX reference of the exact PyTorch forward (including bw)."""
    B, T, xDim = x.shape
    s = s_prev[0]                                                   # squeeze(0)
    x_proj = (x.reshape(-1, xDim) @ params["wx"] + params["bx"]).reshape(B, T, -1)
    s_proj = (s @ params["ws"] + params["bs"])[:, None, :]
    v = (jnp.tanh(s_proj + x_proj) @ params["ww"].T)[..., 0] + params["bw"][0, 0]
    return jax.nn.softmax(v, axis=1)


if __name__ == "__main__":
    sDim, xDim, attDim, T = 32, 16, 32, 8

    key = jax.random.PRNGKey(0)
    k1, k2, k3, kx = jax.random.split(key, 4)

    # Deterministic init mirroring init_weights(): N(0, 0.01) weights, zero bias.
    params = {
        "wx": 0.01 * jax.random.normal(k1, (xDim, attDim), jnp.float32),
        "bx": jnp.zeros((1, attDim), jnp.float32),
        "ws": 0.01 * jax.random.normal(k2, (sDim, attDim), jnp.float32),
        "bs": jnp.zeros((1, attDim), jnp.float32),
        "ww": 0.01 * jax.random.normal(k3, (1, attDim), jnp.float32),
        "bw": jnp.zeros((1, 1), jnp.float32),
    }

    cases = [
        dict(B=32, block_b=None, dtype=jnp.float32, tol=1e-4),    # auto block, grid=1
        dict(B=32, block_b=8, dtype=jnp.float32, tol=1e-4),       # multi-step pipeline, grid=4
        dict(B=2, block_b=None, dtype=jnp.float32, tol=1e-4),     # ragged batch (B % 8 != 0)
        dict(B=32, block_b=16, dtype=jnp.bfloat16, tol=2e-2),     # bf16-x path, grid=2
    ]

    ok = True
    for i, c in enumerate(cases):
        B = c["B"]
        kxx, kss = jax.random.split(jax.random.fold_in(kx, 10 * B + i))
        x = jax.random.normal(kxx, (B, T, xDim), jnp.float32)
        s_prev = jax.random.normal(kss, (1, B, sDim), jnp.float32)

        alpha = jax.block_until_ready(
            attention_unit(x.astype(c["dtype"]), s_prev, params, block_b=c["block_b"]))
        assert alpha.shape == (B, T), alpha.shape

        ref = attention_unit_ref(x, s_prev, params)
        ok &= bool(jnp.allclose(alpha, ref, atol=c["tol"], rtol=c["tol"]))
        ok &= bool(jnp.allclose(jnp.sum(alpha, axis=-1), 1.0, atol=1e-3))

    assert ok, "mismatch vs reference"
    print("KERNEL_OK")
</pallas_src>

<mosaic_0001>
module attributes {stable_mosaic.version = 11 : i64} {
  func.func @_attention_unit_kernel(%arg0: i32, %arg1: memref<256x16xf32, #tpu.memory_space<vmem>>, %arg2: memref<32x32xf32, #tpu.memory_space<vmem>>, %arg3: memref<16x32xf32, #tpu.memory_space<vmem>>, %arg4: memref<1x32xf32, #tpu.memory_space<vmem>>, %arg5: memref<32x8xf32, #tpu.memory_space<vmem>>) attributes {dimension_semantics = [#tpu.dimension_semantics<parallel>], iteration_bounds = array<i64: 1>, scalar_prefetch = 0 : i64, scratch_operands = 0 : i64, tpu.core_type = #tpu.core_type<tc>, window_params = [{transform_indices = @transform_0, window_bounds = array<i64: 256, 16>}, {transform_indices = @transform_1, window_bounds = array<i64: 32, 32>}, {pipeline_mode = #tpu.pipeline_mode<synchronous>, transform_indices = @transform_2, window_bounds = array<i64: 16, 32>}, {pipeline_mode = #tpu.pipeline_mode<synchronous>, transform_indices = @transform_3, window_bounds = array<i64: 1, 32>}, {transform_indices = @transform_4, window_bounds = array<i64: 32, 8>}]} {
    %c0 = arith.constant 0 : index
    %c0_0 = arith.constant 0 : index
    %0 = vector.load %arg1[%c0, %c0_0] : memref<256x16xf32, #tpu.memory_space<vmem>>, vector<256x16xf32>
    %c0_1 = arith.constant 0 : index
    %c0_2 = arith.constant 0 : index
    %1 = vector.load %arg3[%c0_1, %c0_2] : memref<16x32xf32, #tpu.memory_space<vmem>>, vector<16x32xf32>
    %cst = arith.constant dense<0.000000e+00> : vector<256x32xf32>
    %2 = tpu.matmul %0, %1, %cst {dimension_numbers = #tpu.dot_dimension_numbers<[1], [0], [0], [1], [0, 0, 1, 1], [], []>} : vector<256x16xf32>, vector<16x32xf32>, vector<256x32xf32> -> vector<256x32xf32>
    %3 = vector.shape_cast %2 : vector<256x32xf32> to vector<32x8x32xf32>
    %c0_3 = arith.constant 0 : index
    %c0_4 = arith.constant 0 : index
    %4 = vector.load %arg2[%c0_3, %c0_4] : memref<32x32xf32, #tpu.memory_space<vmem>>, vector<32x32xf32>
    %5 = vector.shape_cast %4 : vector<32x32xf32> to vector<32x1x32xf32>
    %6 = vector.broadcast %5 : vector<32x1x32xf32> to vector<32x8x32xf32>
    %7 = arith.addf %3, %6 : vector<32x8x32xf32>
    %8 = math.tanh %7 : vector<32x8x32xf32>
    %c0_5 = arith.constant 0 : index
    %c0_6 = arith.constant 0 : index
    %9 = vector.load %arg4[%c0_5, %c0_6] : memref<1x32xf32, #tpu.memory_space<vmem>>, vector<1x32xf32>
    %10 = vector.shape_cast %9 : vector<1x32xf32> to vector<1x1x32xf32>
    %11 = vector.broadcast %10 : vector<1x1x32xf32> to vector<32x8x32xf32>
    %12 = arith.mulf %8, %11 : vector<32x8x32xf32>
    %cst_7 = arith.constant dense<0.000000e+00> : vector<32x8xf32>
    %13 = vector.multi_reduction <add>, %12, %cst_7 [2] : vector<32x8x32xf32> to vector<32x8xf32>
    %cst_8 = arith.constant dense<0xFF800000> : vector<32xf32>
    %14 = vector.multi_reduction <maximumf>, %13, %cst_8 [1] : vector<32x8xf32> to vector<32xf32>
    %15 = vector.shape_cast %14 : vector<32xf32> to vector<32x1xf32>
    %16 = vector.broadcast %15 : vector<32x1xf32> to vector<32x8xf32>
    %17 = arith.subf %13, %16 : vector<32x8xf32>
    %18 = math.exp %17 : vector<32x8xf32>
    %cst_9 = arith.constant dense<0.000000e+00> : vector<32xf32>
    %19 = vector.multi_reduction <add>, %18, %cst_9 [1] : vector<32x8xf32> to vector<32xf32>
    %20 = vector.shape_cast %19 : vector<32xf32> to vector<32x1xf32>
    %21 = tpu.reciprocal %20 {approx = true} : vector<32x1xf32> -> vector<32x1xf32>
    %22 = arith.mulf %20, %21 : vector<32x1xf32>
    %cst_10 = arith.constant 2.000000e+00 : f32
    %23 = vector.broadcast %cst_10 : f32 to vector<32x1xf32>
    %24 = arith.subf %23, %22 : vector<32x1xf32>
    %25 = arith.mulf %21, %24 : vector<32x1xf32>
    %26 = vector.broadcast %25 : vector<32x1xf32> to vector<32x8xf32>
    %27 = arith.mulf %18, %26 : vector<32x8xf32>
    %c0_11 = arith.constant 0 : index
    %c0_12 = arith.constant 0 : index
    %28 = vector.load %arg5[%c0_11, %c0_12] : memref<32x8xf32, #tpu.memory_space<vmem>>, vector<32x8xf32>
    tpu.vector_store %arg5[%c0_11, %c0_12], %27 {strides = array<i32>} : memref<32x8xf32, #tpu.memory_space<vmem>>, vector<32x8xf32>,
    return
  }
  func.func @transform_0(%arg0: i32) -> (i32, i32) {
    %c0_i32 = arith.constant 0 : i32
    %c0_i32_0 = arith.constant 0 : i32
    return %arg0, %c0_i32 : i32, i32
  }
  func.func @transform_1(%arg0: i32) -> (i32, i32) {
    %c0_i32 = arith.constant 0 : i32
    %c0_i32_0 = arith.constant 0 : i32
    return %arg0, %c0_i32 : i32, i32
  }
  func.func @transform_2(%arg0: i32) -> (i32, i32) {
    %c0_i32 = arith.constant 0 : i32
    %c0_i32_0 = arith.constant 0 : i32
    %c0_i32_1 = arith.constant 0 : i32
    return %c0_i32, %c0_i32_0 : i32, i32
  }
  func.func @transform_3(%arg0: i32) -> (i32, i32) {
    %c0_i32 = arith.constant 0 : i32
    %c0_i32_0 = arith.constant 0 : i32
    %c0_i32_1 = arith.constant 0 : i32
    return %c0_i32, %c0_i32_0 : i32, i32
  }
  func.func @transform_4(%arg0: i32) -> (i32, i32) {
    %c0_i32 = arith.constant 0 : i32
    %c0_i32_0 = arith.constant 0 : i32
    return %arg0, %c0_i32 : i32, i32
  }
}

</mosaic_0001>

<llo_original>
// kernel: tpu_custom_call.1
$region0: #{tpu_custom_call.1}
  #allocation0 [shape = 'u32[]', space=smem, size = 0x4, offset = 0x4, fixed_abs, tag = 'smem constant byte address 0x4 - core index']
  #allocation1 [shape = 'u32[144,128]{1,0:T(1,128)}', space=vmem, size = 0x12000, scoped, tag = 'internal scratch']
  %s0 = inlined_call_operand.vmem [shape: f32[256,16], index: 0, kind: input, shape index: {}]
  %s1 = inlined_call_operand.vmem [shape: f32[32,32], index: 1, kind: input, shape index: {}]
  %s2 = inlined_call_operand.vmem [shape: f32[16,32], index: 2, kind: input, shape index: {}]
  %s3 = inlined_call_operand.vmem [shape: f32[1,32], index: 3, kind: input, shape index: {}]
  %s4 = inlined_call_operand.vmem [shape: f32[32,8], index: 4, kind: output, shape index: {}]
  %s5 = sld [smem:[#allocation0]]
  $region26: #{tpu_custom_call.1} parent=0
    _
  %s7 = ssub.s32 1, %s5
  %s8 = scalar_select 0, %s7, %s5
  // Predicated region
  $region2: #{tpu_custom_call.1} parent=0 // pred_check
    _
  $region3: #{tpu_custom_call.1} parent=0 // pred_check_branch
    %10 = sbr.rel (0) target = $region5
  $region4: #{tpu_custom_call.1} parent=0 // pred_region
    _
  $region5: #{tpu_custom_call.1} parent=0 // pred_fallthru
    _
  // Predicated region
  $region6: #{tpu_custom_call.1} parent=0 // pred_check
    _
  $region7: #{tpu_custom_call.1} parent=0 // pred_check_branch
    %12 = sbr.rel (0) target = $region9
  $region8: #{tpu_custom_call.1} parent=0 // pred_region
    _
  $region9: #{tpu_custom_call.1} parent=0 // pred_fallthru
    _
  // Predicated region
  $region10: #{tpu_custom_call.1} parent=0 // pred_check
    _
  $region11: #{tpu_custom_call.1} parent=0 // pred_check_branch
    %14 = sbr.rel (0) target = $region13
  $region12: #{tpu_custom_call.1} parent=0 // pred_region
    _
  $region13: #{tpu_custom_call.1} parent=0 // pred_fallthru
    _
  // Predicated region
  $region14: #{tpu_custom_call.1} parent=0 // pred_check
    _
  $region15: #{tpu_custom_call.1} parent=0 // pred_check_branch
    %16 = sbr.rel (0) target = $region17
  $region16: #{tpu_custom_call.1} parent=0 // pred_region
    _
  $region17: #{tpu_custom_call.1} parent=0 // pred_fallthru
    _
  %v17 = vld [vmem:[%s0] sm:$0xff]
  %v18 = vld [vmem:[%s0 + $0x8] sm:$0xff]
  %v19 = vld [vmem:[%s0 + $0x10] sm:$0xff]
  %v20 = vld [vmem:[%s0 + $0x18] sm:$0xff]
  %v21 = vld [vmem:[%s0 + $0x20] sm:$0xff]
  %v22 = vld [vmem:[%s0 + $0x28] sm:$0xff]
  %v23 = vld [vmem:[%s0 + $0x30] sm:$0xff]
  %v24 = vld [vmem:[%s0 + $0x38] sm:$0xff]
  %v25 = vld [vmem:[%s0 + $0x40] sm:$0xff]
  %v26 = vld [vmem:[%s0 + $0x48] sm:$0xff]
  %v27 = vld [vmem:[%s0 + $0x50] sm:$0xff]
  %v28 = vld [vmem:[%s0 + $0x58] sm:$0xff]
  %v29 = vld [vmem:[%s0 + $0x60] sm:$0xff]
  %v30 = vld [vmem:[%s0 + $0x68] sm:$0xff]
  %v31 = vld [vmem:[%s0 + $0x70] sm:$0xff]
  %v32 = vld [vmem:[%s0 + $0x78] sm:$0xff]
  %v33 = vld [vmem:[%s0 + $0x80] sm:$0xff]
  %v34 = vld [vmem:[%s0 + $0x88] sm:$0xff]
  %v35 = vld [vmem:[%s0 + $0x90] sm:$0xff]
  %v36 = vld [vmem:[%s0 + $0x98] sm:$0xff]
  %v37 = vld [vmem:[%s0 + $0xa0] sm:$0xff]
  %v38 = vld [vmem:[%s0 + $0xa8] sm:$0xff]
  %v39 = vld [vmem:[%s0 + $0xb0] sm:$0xff]
  %v40 = vld [vmem:[%s0 + $0xb8] sm:$0xff]
  %v41 = vld [vmem:[%s0 + $0xc0] sm:$0xff]
  %v42 = vld [vmem:[%s0 + $0xc8] sm:$0xff]
  %v43 = vld [vmem:[%s0 + $0xd0] sm:$0xff]
  %v44 = vld [vmem:[%s0 + $0xd8] sm:$0xff]
  %v45 = vld [vmem:[%s0 + $0xe0] sm:$0xff]
  %v46 = vld [vmem:[%s0 + $0xe8] sm:$0xff]
  %v47 = vld [vmem:[%s0 + $0xf0] sm:$0xff]
  %v48 = vld [vmem:[%s0 + $0xf8] sm:$0xff]
  %v49 = vld [vmem:[%s2] sm:$0xff]
  %v50 = vld [vmem:[%s2 + $0x8] sm:$0xff]
  %vm51 = vcmask 130048
  %v53 = vsel %vm51, %v17, 0
  %v56 = vsel %vm51, %v18, 0
  %v59 = vsel %vm51, %v19, 0
  %v62 = vsel %vm51, %v20, 0
  %v65 = vsel %vm51, %v21, 0
  %v68 = vsel %vm51, %v22, 0
  %v71 = vsel %vm51, %v23, 0
  %v74 = vsel %vm51, %v24, 0
  %v77 = vsel %vm51, %v25, 0
  %v80 = vsel %vm51, %v26, 0
  %v83 = vsel %vm51, %v27, 0
  %v86 = vsel %vm51, %v28, 0
  %v89 = vsel %vm51, %v29, 0
  %v92 = vsel %vm51, %v30, 0
  %v95 = vsel %vm51, %v31, 0
  %v98 = vsel %vm51, %v32, 0
  %v101 = vsel %vm51, %v33, 0
  %v104 = vsel %vm51, %v34, 0
  %v107 = vsel %vm51, %v35, 0
  %v110 = vsel %vm51, %v36, 0
  %v113 = vsel %vm51, %v37, 0
  %v116 = vsel %vm51, %v38, 0
  %v119 = vsel %vm51, %v39, 0
  %v122 = vsel %vm51, %v40, 0
  %v125 = vsel %vm51, %v41, 0
  %v128 = vsel %vm51, %v42, 0
  %v131 = vsel %vm51, %v43, 0
  %v134 = vsel %vm51, %v44, 0
  %v137 = vsel %vm51, %v45, 0
  %v140 = vsel %vm51, %v46, 0
  %v143 = vsel %vm51, %v47, 0
  %v146 = vsel %vm51, %v48, 0
  %148 = vmatprep.subr.mxu0 0.0
  %149 = vmatpush1.msra.mxu0 %v49
  %150 = vmatprep.subr.mxu0 0.0
  %151 = vmatpush1.msra.mxu0 %v50
  %152 = vmatprep.subr.mxu0 0.0
  %153 = vmatpush1.msra.mxu0 0.0
  %154 = vmatprep.subr.mxu0 0.0
  %155 = vmatpush1.msra.mxu0 0.0
  %156 = vmatprep.subr.mxu0 0.0
  %157 = vmatpush1.msra.mxu0 0.0
  %158 = vmatprep.subr.mxu0 0.0
  %159 = vmatpush1.msra.mxu0 0.0
  %160 = vmatprep.subr.mxu0 0.0
  %161 = vmatpush1.msra.mxu0 0.0
  %162 = vmatprep.subr.mxu0 0.0
  %163 = vmatpush1.msra.mxu0 0.0
  %164 = vmatprep.subr.mxu0 0.0
  %165 = vmatpush1.msra.mxu0 0.0
  %166 = vmatprep.subr.mxu0 0.0
  %167 = vmatpush1.msra.mxu0 0.0
  %168 = vmatprep.subr.mxu0 0.0
  %169 = vmatpush1.msra.mxu0 0.0
  %170 = vmatprep.subr.mxu0 0.0
  %171 = vmatpush1.msra.mxu0 0.0
  %172 = vmatprep.subr.mxu0 0.0
  %173 = vmatpush1.msra.mxu0 0.0
  %174 = vmatprep.subr.mxu0 0.0
  %175 = vmatpush1.msra.mxu0 0.0
  %176 = vmatprep.subr.mxu0 0.0
  %177 = vmatpush1.msra.mxu0 0.0
  %178 = vmatprep.subr.mxu0 0.0
  %179 = vmatpush1.msra.mxu0 0.0
  %180 = vmatprep.subr.mxu0 0.0
  %181 = vmatpush1.msra.mxu0 0.0
  %182 = vmatprep.subr.mxu0 0.0
  %183 = vmatpush1.msra.mxu0 0.0
  %184 = vmatprep.subr.mxu0 0.0
  %185 = vmatpush1.msra.mxu0 0.0
  %186 = vmatprep.subr.mxu0 0.0
  %187 = vmatpush1.msra.mxu0 0.0
  %188 = vmatprep.subr.mxu0 0.0
  %189 = vmatpush1.msra.mxu0 0.0
  %190 = vmatprep.subr.mxu0 0.0
  %191 = vmatpush1.msra.mxu0 0.0
  %192 = vmatprep.subr.mxu0 0.0
  %193 = vmatpush1.msra.mxu0 0.0
  %194 = vmatprep.subr.mxu0 0.0
  %195 = vmatpush1.msra.mxu0 0.0
  %196 = vmatprep.subr.mxu0 0.0
  %197 = vmatpush1.msra.mxu0 0.0
  %198 = vmatprep.subr.mxu0 0.0
  %199 = vmatpush1.msra.mxu0 0.0
  %200 = vmatprep.subr.mxu0 0.0
  %201 = vmatpush1.msra.mxu0 0.0
  %202 = vmatprep.subr.mxu0 0.0
  %203 = vmatpush1.msra.mxu0 0.0
  %204 = vmatprep.subr.mxu0 0.0
  %205 = vmatpush1.msra.mxu0 0.0
  %206 = vmatprep.subr.mxu0 0.0
  %207 = vmatpush1.msra.mxu0 0.0
  %208 = vmatprep.subr.mxu0 0.0
  %209 = vmatpush1.msra.mxu0 0.0
  %210 = vmatprep.subr.mxu0 0.0
  %211 = vmatpush1.msra.mxu0 0.0
  %212 = vmatprep.mubr.f32.mxu0 0.0
  %213 = vmatmul.mubr.f32.gmra.mrb[0].mxu0 %v53
  %v214 = vpop.f32.mrb[0].mxu0
  %v215 = vadd.f32 0.0, %v214
  %v216 = vpop.f32.mrb[0].mxu0
  %217 = vmatprep.mubr.f32.mxu0 0.0
  %218 = vmatmul.mubr.f32.gmra.mrb[0].mxu0 %v56
  %v219 = vpop.f32.mrb[0].mxu0
  %v220 = vadd.f32 0.0, %v219
  %v221 = vpop.f32.mrb[0].mxu0
  %222 = vmatprep.mubr.f32.mxu0 0.0
  %223 = vmatmul.mubr.f32.gmra.mrb[0].mxu0 %v59
  %v224 = vpop.f32.mrb[0].mxu0
  %v225 = vadd.f32 0.0, %v224
  %v226 = vpop.f32.mrb[0].mxu0
  %227 = vmatprep.mubr.f32.mxu0 0.0
  %228 = vmatmul.mubr.f32.gmra.mrb[0].mxu0 %v62
  %v229 = vpop.f32.mrb[0].mxu0
  %v230 = vadd.f32 0.0, %v229
  %v231 = vpop.f32.mrb[0].mxu0
  %232 = vmatprep.mubr.f32.mxu0 0.0
  %233 = vmatmul.mubr.f32.gmra.mrb[0].mxu0 %v65
  %v234 = vpop.f32.mrb[0].mxu0
  %v235 = vadd.f32 0.0, %v234
  %v236 = vpop.f32.mrb[0].mxu0
  %237 = vmatprep.mubr.f32.mxu0 0.0
  %238 = vmatmul.mubr.f32.gmra.mrb[0].mxu0 %v68
  %v239 = vpop.f32.mrb[0].mxu0
  %v240 = vadd.f32 0.0, %v239
  %v241 = vpop.f32.mrb[0].mxu0
  %242 = vmatprep.mubr.f32.mxu0 0.0
  %243 = vmatmul.mubr.f32.gmra.mrb[0].mxu0 %v71
  %v244 = vpop.f32.mrb[0].mxu0
  %v245 = vadd.f32 0.0, %v244
  %v246 = vpop.f32.mrb[0].mxu0
  %247 = vmatprep.mubr.f32.mxu0 0.0
  %248 = vmatmul.mubr.f32.gmra.mrb[0].mxu0 %v74
  %v249 = vpop.f32.mrb[0].mxu0
  %v250 = vadd.f32 0.0, %v249
  %v251 = vpop.f32.mrb[0].mxu0
  %252 = vmatprep.mubr.f32.mxu0 0.0
  %253 = vmatmul.mubr.f32.gmra.mrb[0].mxu0 %v77
  %v254 = vpop.f32.mrb[0].mxu0
  %v255 = vadd.f32 0.0, %v254
  %v256 = vpop.f32.mrb[0].mxu0
  %257 = vmatprep.mubr.f32.mxu0 0.0
  %258 = vmatmul.mubr.f32.gmra.mrb[0].mxu0 %v80
  %v259 = vpop.f32.mrb[0].mxu0
  %v260 = vadd.f32 0.0, %v259
  %v261 = vpop.f32.mrb[0].mxu0
  %262 = vmatprep.mubr.f32.mxu0 0.0
  %263 = vmatmul.mubr.f32.gmra.mrb[0].mxu0 %v83
  %v264 = vpop.f32.mrb[0].mxu0
  %v265 = vadd.f32 0.0, %v264
  %v266 = vpop.f32.mrb[0].mxu0
  %267 = vmatprep.mubr.f32.mxu0 0.0
  %268 = vmatmul.mubr.f32.gmra.mrb[0].mxu0 %v86
  %v269 = vpop.f32.mrb[0].mxu0
  %v270 = vadd.f32 0.0, %v269
  %v271 = vpop.f32.mrb[0].mxu0
  %272 = vmatprep.mubr.f32.mxu0 0.0
  %273 = vmatmul.mubr.f32.gmra.mrb[0].mxu0 %v89
  %v274 = vpop.f32.mrb[0].mxu0
  %v275 = vadd.f32 0.0, %v274
  %v276 = vpop.f32.mrb[0].mxu0
  %277 = vmatprep.mubr.f32.mxu0 0.0
  %278 = vmatmul.mubr.f32.gmra.mrb[0].mxu0 %v92
  %v279 = vpop.f32.mrb[0].mxu0
  %v280 = vadd.f32 0.0, %v279
  %v281 = vpop.f32.mrb[0].mxu0
  %282 = vmatprep.mubr.f32.mxu0 0.0
  %283 = vmatmul.mubr.f32.gmra.mrb[0].mxu0 %v95
  %v284 = vpop.f32.mrb[0].mxu0
  %v285 = vadd.f32 0.0, %v284
  %v286 = vpop.f32.mrb[0].mxu0
  %287 = vmatprep.mubr.f32.mxu0 0.0
  %288 = vmatmul.mubr.f32.gmra.mrb[0].mxu0 %v98
  %v289 = vpop.f32.mrb[0].mxu0
  %v290 = vadd.f32 0.0, %v289
  %v291 = vpop.f32.mrb[0].mxu0
  %292 = vmatprep.mubr.f32.mxu0 0.0
  %293 = vmatmul.mubr.f32.gmra.mrb[0].mxu0 %v101
  %v294 = vpop.f32.mrb[0].mxu0
  %v295 = vadd.f32 0.0, %v294
  %v296 = vpop.f32.mrb[0].mxu0
  %297 = vmatprep.mubr.f32.mxu0 0.0
  %298 = vmatmul.mubr.f32.gmra.mrb[0].mxu0 %v104
  %v299 = vpop.f32.mrb[0].mxu0
  %v300 = vadd.f32 0.0, %v299
  %v301 = vpop.f32.mrb[0].mxu0
  %302 = vmatprep.mubr.f32.mxu0 0.0
  %303 = vmatmul.mubr.f32.gmra.mrb[0].mxu0 %v107
  %v304 = vpop.f32.mrb[0].mxu0
  %v305 = vadd.f32 0.0, %v304
  %v306 = vpop.f32.mrb[0].mxu0
  %307 = vmatprep.mubr.f32.mxu0 0.0
  %308 = vmatmul.mubr.f32.gmra.mrb[0].mxu0 %v110
  %v309 = vpop.f32.mrb[0].mxu0
  %v310 = vadd.f32 0.0, %v309
  %v311 = vpop.f32.mrb[0].mxu0
  %312 = vmatprep.mubr.f32.mxu0 0.0
  %313 = vmatmul.mubr.f32.gmra.mrb[0].mxu0 %v113
  %v314 = vpop.f32.mrb[0].mxu0
  %v315 = vadd.f32 0.0, %v314
  %v316 = vpop.f32.mrb[0].mxu0
  %317 = vmatprep.mubr.f32.mxu0 0.0
  %318 = vmatmul.mubr.f32.gmra.mrb[0].mxu0 %v116
  %v319 = vpop.f32.mrb[0].mxu0
  %v320 = vadd.f32 0.0, %v319
  %v321 = vpop.f32.mrb[0].mxu0
  %322 = vmatprep.mubr.f32.mxu0 0.0
  %323 = vmatmul.mubr.f32.gmra.mrb[0].mxu0 %v119
  %v324 = vpop.f32.mrb[0].mxu0
  %v325 = vadd.f32 0.0, %v324
  %v326 = vpop.f32.mrb[0].mxu0
  %327 = vmatprep.mubr.f32.mxu0 0.0
  %328 = vmatmul.mubr.f32.gmra.mrb[0].mxu0 %v122
  %v329 = vpop.f32.mrb[0].mxu0
  %v330 = vadd.f32 0.0, %v329
  %v331 = vpop.f32.mrb[0].mxu0
  %332 = vmatprep.mubr.f32.mxu0 0.0
  %333 = vmatmul.mubr.f32.gmra.mrb[0].mxu0 %v125
  %v334 = vpop.f32.mrb[0].mxu0
  %v335 = vadd.f32 0.0, %v334
  %v336 = vpop.f32.mrb[0].mxu0
  %337 = vmatprep.mubr.f32.mxu0 0.0
  %338 = vmatmul.mubr.f32.gmra.mrb[0].mxu0 %v128
  %v339 = vpop.f32.mrb[0].mxu0
  %v340 = vadd.f32 0.0, %v339
  %v341 = vpop.f32.mrb[0].mxu0
  %342 = vmatprep.mubr.f32.mxu0 0.0
  %343 = vmatmul.mubr.f32.gmra.mrb[0].mxu0 %v131
  %v344 = vpop.f32.mrb[0].mxu0
  %v345 = vadd.f32 0.0, %v344
  %v346 = vpop.f32.mrb[0].mxu0
  %347 = vmatprep.mubr.f32.mxu0 0.0
  %348 = vmatmul.mubr.f32.gmra.mrb[0].mxu0 %v134
  %v349 = vpop.f32.mrb[0].mxu0
  %v350 = vadd.f32 0.0, %v349
  %v351 = vpop.f32.mrb[0].mxu0
  %352 = vmatprep.mubr.f32.mxu0 0.0
  %353 = vmatmul.mubr.f32.gmra.mrb[0].mxu0 %v137
  %v354 = vpop.f32.mrb[0].mxu0
  %v355 = vadd.f32 0.0, %v354
  %v356 = vpop.f32.mrb[0].mxu0
  %357 = vmatprep.mubr.f32.mxu0 0.0
  %358 = vmatmul.mubr.f32.gmra.mrb[0].mxu0 %v140
  %v359 = vpop.f32.mrb[0].mxu0
  %v360 = vadd.f32 0.0, %v359
  %v361 = vpop.f32.mrb[0].mxu0
  %362 = vmatprep.mubr.f32.mxu0 0.0
  %363 = vmatmul.mubr.f32.gmra.mrb[0].mxu0 %v143
  %v364 = vpop.f32.mrb[0].mxu0
  %v365 = vadd.f32 0.0, %v364
  %v366 = vpop.f32.mrb[0].mxu0
  %367 = vmatprep.mubr.f32.mxu0 0.0
  %368 = vmatmul.mubr.f32.gmra.mrb[0].mxu0 %v146
  %v369 = vpop.f32.mrb[0].mxu0
  %v370 = vadd.f32 0.0, %v369
  %v371 = vpop.f32.mrb[0].mxu0
  %372 = vdwg.mxu0
  %v373 = vld [vmem:[%s1] sm:$0xff]
  %v374 = vld [vmem:[%s1 + $0x8] sm:$0xff]
  %v375 = vld [vmem:[%s1 + $0x10] sm:$0xff]
  %v376 = vld [vmem:[%s1 + $0x18] sm:$0xff]
  %v381 = vcombine.high %v373, %v373
  %v383 = vunpack.c.l.s4 1966171168
  %v384 = vunpack.c.0.s8 %v383
  %v385 = vlaneseq
  %v386 = vshrl.u32 %v385, 7
  %v387 = vsub.s32 %v384, %v386
  %v388 = vrot.slane %v373, %v387
  %v390 = vunpack.c.l.s4 1966171168
  %v391 = vunpack.c.0.s8 %v390
  %v392 = vlaneseq
  %v393 = vshrl.u32 %v392, 7
  %v394 = vsub.s32 %v391, %v393
  %v395 = vrot.slane %v381, %v394
  %v396 = vcombine.high %v388, %v388
  %v397 = vcombine.high %v395, %v395
  %v399 = vunpack.c.l.s4 1966171168
  %v400 = vunpack.c.0.s8 %v399
  %v401 = vlaneseq
  %v402 = vshrl.u32 %v401, 7
  %v403 = vsub.s32 %v400, %v402
  %v404 = vrot.slane %v388, %v403
  %v406 = vunpack.c.l.s4 1966171168
  %v407 = vunpack.c.0.s8 %v406
  %v408 = vlaneseq
  %v409 = vshrl.u32 %v408, 7
  %v410 = vsub.s32 %v407, %v409
  %v411 = vrot.slane %v395, %v410
  %v413 = vunpack.c.l.s4 1966171168
  %v414 = vunpack.c.0.s8 %v413
  %v415 = vlaneseq
  %v416 = vshrl.u32 %v415, 7
  %v417 = vsub.s32 %v414, %v416
  %v418 = vrot.slane %v396, %v417
  %v420 = vunpack.c.l.s4 1966171168
  %v421 = vunpack.c.0.s8 %v420
  %v422 = vlaneseq
  %v423 = vshrl.u32 %v422, 7
  %v424 = vsub.s32 %v421, %v423
  %v425 = vrot.slane %v397, %v424
  %v426 = vcombine.high %v404, %v404
  %v427 = vcombine.high %v411, %v411
  %v428 = vcombine.high %v418, %v418
  %v429 = vcombine.high %v425, %v425
  %v430 = vcombine.high %v374, %v374
  %v432 = vunpack.c.l.s4 1966171168
  %v433 = vunpack.c.0.s8 %v432
  %v434 = vlaneseq
  %v435 = vshrl.u32 %v434, 7
  %v436 = vsub.s32 %v433, %v435
  %v437 = vrot.slane %v374, %v436
  %v439 = vunpack.c.l.s4 1966171168
  %v440 = vunpack.c.0.s8 %v439
  %v441 = vlaneseq
  %v442 = vshrl.u32 %v441, 7
  %v443 = vsub.s32 %v440, %v442
  %v444 = vrot.slane %v430, %v443
  %v445 = vcombine.high %v437, %v437
  %v446 = vcombine.high %v444, %v444
  %v448 = vunpack.c.l.s4 1966171168
  %v449 = vunpack.c.0.s8 %v448
  %v450 = vlaneseq
  %v451 = vshrl.u32 %v450, 7
  %v452 = vsub.s32 %v449, %v451
  %v453 = vrot.slane %v437, %v452
  %v455 = vunpack.c.l.s4 1966171168
  %v456 = vunpack.c.0.s8 %v455
  %v457 = vlaneseq
  %v458 = vshrl.u32 %v457, 7
  %v459 = vsub.s32 %v456, %v458
  %v460 = vrot.slane %v444, %v459
  %v462 = vunpack.c.l.s4 1966171168
  %v463 = vunpack.c.0.s8 %v462
  %v464 = vlaneseq
  %v465 = vshrl.u32 %v464, 7
  %v466 = vsub.s32 %v463, %v465
  %v467 = vrot.slane %v445, %v466
  %v469 = vunpack.c.l.s4 1966171168
  %v470 = vunpack.c.0.s8 %v469
  %v471 = vlaneseq
  %v472 = vshrl.u32 %v471, 7
  %v473 = vsub.s32 %v470, %v472
  %v474 = vrot.slane %v446, %v473
  %v475 = vcombine.high %v453, %v453
  %v476 = vcombine.high %v460, %v460
  %v477 = vcombine.high %v467, %v467
  %v478 = vcombine.high %v474, %v474
  %v479 = vcombine.high %v375, %v375
  %v481 = vunpack.c.l.s4 1966171168
  %v482 = vunpack.c.0.s8 %v481
  %v483 = vlaneseq
  %v484 = vshrl.u32 %v483, 7
  %v485 = vsub.s32 %v482, %v484
  %v486 = vrot.slane %v375, %v485
  %v488 = vunpack.c.l.s4 1966171168
  %v489 = vunpack.c.0.s8 %v488
  %v490 = vlaneseq
  %v491 = vshrl.u32 %v490, 7
  %v492 = vsub.s32 %v489, %v491
  %v493 = vrot.slane %v479, %v492
  %v494 = vcombine.high %v486, %v486
  %v495 = vcombine.high %v493, %v493
  %v497 = vunpack.c.l.s4 1966171168
  %v498 = vunpack.c.0.s8 %v497
  %v499 = vlaneseq
  %v500 = vshrl.u32 %v499, 7
  %v501 = vsub.s32 %v498, %v500
  %v502 = vrot.slane %v486, %v501
  %v504 = vunpack.c.l.s4 1966171168
  %v505 = vunpack.c.0.s8 %v504
  %v506 = vlaneseq
  %v507 = vshrl.u32 %v506, 7
  %v508 = vsub.s32 %v505, %v507
  %v509 = vrot.slane %v493, %v508
  %v511 = vunpack.c.l.s4 1966171168
  %v512 = vunpack.c.0.s8 %v511
  %v513 = vlaneseq
  %v514 = vshrl.u32 %v513, 7
  %v515 = vsub.s32 %v512, %v514
  %v516 = vrot.slane %v494, %v515
  %v518 = vunpack.c.l.s4 1966171168
  %v519 = vunpack.c.0.s8 %v518
  %v520 = vlaneseq
  %v521 = vshrl.u32 %v520, 7
  %v522 = vsub.s32 %v519, %v521
  %v523 = vrot.slane %v495, %v522
  %v524 = vcombine.high %v502, %v502
  %v525 = vcombine.high %v509, %v509
  %v526 = vcombine.high %v516, %v516
  %v527 = vcombine.high %v523, %v523
  %v528 = vcombine.high %v376, %v376
  %v530 = vunpack.c.l.s4 1966171168
  %v531 = vunpack.c.0.s8 %v530
  %v532 = vlaneseq
  %v533 = vshrl.u32 %v532, 7
  %v534 = vsub.s32 %v531, %v533
  %v535 = vrot.slane %v376, %v534
  %v537 = vunpack.c.l.s4 1966171168
  %v538 = vunpack.c.0.s8 %v537
  %v539 = vlaneseq
  %v540 = vshrl.u32 %v539, 7
  %v541 = vsub.s32 %v538, %v540
  %v542 = vrot.slane %v528, %v541
  %v543 = vcombine.high %v535, %v535
  %v544 = vcombine.high %v542, %v542
  %v546 = vunpack.c.l.s4 1966171168
  %v547 = vunpack.c.0.s8 %v546
  %v548 = vlaneseq
  %v549 = vshrl.u32 %v548, 7
  %v550 = vsub.s32 %v547, %v549
  %v551 = vrot.slane %v535, %v550
  %v553 = vunpack.c.l.s4 1966171168
  %v554 = vunpack.c.0.s8 %v553
  %v555 = vlaneseq
  %v556 = vshrl.u32 %v555, 7
  %v557 = vsub.s32 %v554, %v556
  %v558 = vrot.slane %v542, %v557
  %v560 = vunpack.c.l.s4 1966171168
  %v561 = vunpack.c.0.s8 %v560
  %v562 = vlaneseq
  %v563 = vshrl.u32 %v562, 7
  %v564 = vsub.s32 %v561, %v563
  %v565 = vrot.slane %v543, %v564
  %v567 = vunpack.c.l.s4 1966171168
  %v568 = vunpack.c.0.s8 %v567
  %v569 = vlaneseq
  %v570 = vshrl.u32 %v569, 7
  %v571 = vsub.s32 %v568, %v570
  %v572 = vrot.slane %v544, %v571
  %v573 = vcombine.high %v551, %v551
  %v574 = vcombine.high %v558, %v558
  %v575 = vcombine.high %v565, %v565
  %v576 = vcombine.high %v572, %v572
  %v577 = vlaneseq
  %v578 = vshrl.u32 %v577, 7
  %v579 = vsub.s32 0, %v578
  %v580 = vrot.slane %v404, %v579
  %v581 = vlaneseq
  %v582 = vshrl.u32 %v581, 7
  %v583 = vsub.s32 0, %v582
  %v584 = vrot.slane %v418, %v583
  %v585 = vlaneseq
  %v586 = vshrl.u32 %v585, 7
  %v587 = vsub.s32 0, %v586
  %v588 = vrot.slane %v426, %v587
  %v589 = vlaneseq
  %v590 = vshrl.u32 %v589, 7
  %v591 = vsub.s32 0, %v590
  %v592 = vrot.slane %v428, %v591
  %v593 = vlaneseq
  %v594 = vshrl.u32 %v593, 7
  %v595 = vsub.s32 0, %v594
  %v596 = vrot.slane %v411, %v595
  %v597 = vlaneseq
  %v598 = vshrl.u32 %v597, 7
  %v599 = vsub.s32 0, %v598
  %v600 = vrot.slane %v425, %v599
  %v601 = vlaneseq
  %v602 = vshrl.u32 %v601, 7
  %v603 = vsub.s32 0, %v602
  %v604 = vrot.slane %v427, %v603
  %v605 = vlaneseq
  %v606 = vshrl.u32 %v605, 7
  %v607 = vsub.s32 0, %v606
  %v608 = vrot.slane %v429, %v607
  %v609 = vlaneseq
  %v610 = vshrl.u32 %v609, 7
  %v611 = vsub.s32 0, %v610
  %v612 = vrot.slane %v453, %v611
  %v613 = vlaneseq
  %v614 = vshrl.u32 %v613, 7
  %v615 = vsub.s32 0, %v614
  %v616 = vrot.slane %v467, %v615
  %v617 = vlaneseq
  %v618 = vshrl.u32 %v617, 7
  %v619 = vsub.s32 0, %v618
  %v620 = vrot.slane %v475, %v619
  %v621 = vlaneseq
  %v622 = vshrl.u32 %v621, 7
  %v623 = vsub.s32 0, %v622
  %v624 = vrot.slane %v477, %v623
  %v625 = vlaneseq
  %v626 = vshrl.u32 %v625, 7
  %v627 = vsub.s32 0, %v626
  %v628 = vrot.slane %v460, %v627
  %v629 = vlaneseq
  %v630 = vshrl.u32 %v629, 7
  %v631 = vsub.s32 0, %v630
  %v632 = vrot.slane %v474, %v631
  %v633 = vlaneseq
  %v634 = vshrl.u32 %v633, 7
  %v635 = vsub.s32 0, %v634
  %v636 = vrot.slane %v476, %v635
  %v637 = vlaneseq
  %v638 = vshrl.u32 %v637, 7
  %v639 = vsub.s32 0, %v638
  %v640 = vrot.slane %v478, %v639
  %v641 = vlaneseq
  %v642 = vshrl.u32 %v641, 7
  %v643 = vsub.s32 0, %v642
  %v644 = vrot.slane %v502, %v643
  %v645 = vlaneseq
  %v646 = vshrl.u32 %v645, 7
  %v647 = vsub.s32 0, %v646
  %v648 = vrot.slane %v516, %v647
  %v649 = vlaneseq
  %v650 = vshrl.u32 %v649, 7
  %v651 = vsub.s32 0, %v650
  %v652 = vrot.slane %v524, %v651
  %v653 = vlaneseq
  %v654 = vshrl.u32 %v653, 7
  %v655 = vsub.s32 0, %v654
  %v656 = vrot.slane %v526, %v655
  %v657 = vlaneseq
  %v658 = vshrl.u32 %v657, 7
  %v659 = vsub.s32 0, %v658
  %v660 = vrot.slane %v509, %v659
  %v661 = vlaneseq
  %v662 = vshrl.u32 %v661, 7
  %v663 = vsub.s32 0, %v662
  %v664 = vrot.slane %v523, %v663
  %v665 = vlaneseq
  %v666 = vshrl.u32 %v665, 7
  %v667 = vsub.s32 0, %v666
  %v668 = vrot.slane %v525, %v667
  %v669 = vlaneseq
  %v670 = vshrl.u32 %v669, 7
  %v671 = vsub.s32 0, %v670
  %v672 = vrot.slane %v527, %v671
  %v673 = vlaneseq
  %v674 = vshrl.u32 %v673, 7
  %v675 = vsub.s32 0, %v674
  %v676 = vrot.slane %v551, %v675
  %v677 = vlaneseq
  %v678 = vshrl.u32 %v677, 7
  %v679 = vsub.s32 0, %v678
  %v680 = vrot.slane %v565, %v679
  %v681 = vlaneseq
  %v682 = vshrl.u32 %v681, 7
  %v683 = vsub.s32 0, %v682
  %v684 = vrot.slane %v573, %v683
  %v685 = vlaneseq
  %v686 = vshrl.u32 %v685, 7
  %v687 = vsub.s32 0, %v686
  %v688 = vrot.slane %v575, %v687
  %v689 = vlaneseq
  %v690 = vshrl.u32 %v689, 7
  %v691 = vsub.s32 0, %v690
  %v692 = vrot.slane %v558, %v691
  %v693 = vlaneseq
  %v694 = vshrl.u32 %v693, 7
  %v695 = vsub.s32 0, %v694
  %v696 = vrot.slane %v572, %v695
  %v697 = vlaneseq
  %v698 = vshrl.u32 %v697, 7
  %v699 = vsub.s32 0, %v698
  %v700 = vrot.slane %v574, %v699
  %v701 = vlaneseq
  %v702 = vshrl.u32 %v701, 7
  %v703 = vsub.s32 0, %v702
  %v704 = vrot.slane %v576, %v703
  %v737 = vadd.f32 %v215, %v580
  %v738 = vadd.f32 %v220, %v584
  %v739 = vadd.f32 %v225, %v588
  %v740 = vadd.f32 %v230, %v592
  %v741 = vadd.f32 %v235, %v596
  %v742 = vadd.f32 %v240, %v600
  %v743 = vadd.f32 %v245, %v604
  %v744 = vadd.f32 %v250, %v608
  %v745 = vadd.f32 %v255, %v612
  %v746 = vadd.f32 %v260, %v616
  %v747 = vadd.f32 %v265, %v620
  %v748 = vadd.f32 %v270, %v624
  %v749 = vadd.f32 %v275, %v628
  %v750 = vadd.f32 %v280, %v632
  %v751 = vadd.f32 %v285, %v636
  %v752 = vadd.f32 %v290, %v640
  %v753 = vadd.f32 %v295, %v644
  %v754 = vadd.f32 %v300, %v648
  %v755 = vadd.f32 %v305, %v652
  %v756 = vadd.f32 %v310, %v656
  %v757 = vadd.f32 %v315, %v660
  %v758 = vadd.f32 %v320, %v664
  %v759 = vadd.f32 %v325, %v668
  %v760 = vadd.f32 %v330, %v672
  %v761 = vadd.f32 %v335, %v676
  %v762 = vadd.f32 %v340, %v680
  %v763 = vadd.f32 %v345, %v684
  %v764 = vadd.f32 %v350, %v688
  %v765 = vadd.f32 %v355, %v692
  %v766 = vadd.f32 %v360, %v696
  %v767 = vadd.f32 %v365, %v700
  %v768 = vadd.f32 %v370, %v704
  %v769 = vtanh.pop %v737
  %v770 = vtanh.pop %v738
  %v771 = vtanh.pop %v739
  %v772 = vtanh.pop %v740
  %v773 = vtanh.pop %v741
  %v774 = vtanh.pop %v742
  %v775 = vtanh.pop %v743
  %v776 = vtanh.pop %v744
  %v777 = vtanh.pop %v745
  %v778 = vtanh.pop %v746
  %v779 = vtanh.pop %v747
  %v780 = vtanh.pop %v748
  %v781 = vtanh.pop %v749
  %v782 = vtanh.pop %v750
  %v783 = vtanh.pop %v751
  %v784 = vtanh.pop %v752
  %v785 = vtanh.pop %v753
  %v786 = vtanh.pop %v754
  %v787 = vtanh.pop %v755
  %v788 = vtanh.pop %v756
  %v789 = vtanh.pop %v757
  %v790 = vtanh.pop %v758
  %v791 = vtanh.pop %v759
  %v792 = vtanh.pop %v760
  %v793 = vtanh.pop %v761
  %v794 = vtanh.pop %v762
  %v795 = vtanh.pop %v763
  %v796 = vtanh.pop %v764
  %v797 = vtanh.pop %v765
  %v798 = vtanh.pop %v766
  %v799 = vtanh.pop %v767
  %v800 = vtanh.pop %v768
  %v801 = vld [vmem:[%s3] sm:$0x1]
  %v803 = vlaneseq
  %v804 = vshrl.u32 %v803, 7
  %v805 = vsub.s32 0, %v804
  %v806 = vrot.slane %v801, %v805
  %v808 = vmul.f32 %v769, %v806
  %v809 = vmul.f32 %v770, %v806
  %v810 = vmul.f32 %v771, %v806
  %v811 = vmul.f32 %v772, %v806
  %v812 = vmul.f32 %v773, %v806
  %v813 = vmul.f32 %v774, %v806
  %v814 = vmul.f32 %v775, %v806
  %v815 = vmul.f32 %v776, %v806
  %v816 = vmul.f32 %v777, %v806
  %v817 = vmul.f32 %v778, %v806
  %v818 = vmul.f32 %v779, %v806
  %v819 = vmul.f32 %v780, %v806
  %v820 = vmul.f32 %v781, %v806
  %v821 = vmul.f32 %v782, %v806
  %v822 = vmul.f32 %v783, %v806
  %v823 = vmul.f32 %v784, %v806
  %v824 = vmul.f32 %v785, %v806
  %v825 = vmul.f32 %v786, %v806
  %v826 = vmul.f32 %v787, %v806
  %v827 = vmul.f32 %v788, %v806
  %v828 = vmul.f32 %v789, %v806
  %v829 = vmul.f32 %v790, %v806
  %v830 = vmul.f32 %v791, %v806
  %v831 = vmul.f32 %v792, %v806
  %v832 = vmul.f32 %v793, %v806
  %v833 = vmul.f32 %v794, %v806
  %v834 = vmul.f32 %v795, %v806
  %v835 = vmul.f32 %v796, %v806
  %v836 = vmul.f32 %v797, %v806
  %v837 = vmul.f32 %v798, %v806
  %v838 = vmul.f32 %v799, %v806
  %v839 = vmul.f32 %v800, %v806
  %vm840 = vcmask 261120
  %v841 = vsel %vm840, %v808, 0.0
  %842 = vadd.xlane.f32.xlu0 %v841
  %v843 = vpop.xlane.xlu0 %842
  %v844 = vsel %vm840, %v809, 0.0
  %845 = vadd.xlane.f32.xlu0 %v844
  %v846 = vpop.xlane.xlu0 %845
  %v847 = vsel %vm840, %v810, 0.0
  %848 = vadd.xlane.f32.xlu0 %v847
  %v849 = vpop.xlane.xlu0 %848
  %v850 = vsel %vm840, %v811, 0.0
  %851 = vadd.xlane.f32.xlu0 %v850
  %v852 = vpop.xlane.xlu0 %851
  %v853 = vsel %vm840, %v812, 0.0
  %854 = vadd.xlane.f32.xlu0 %v853
  %v855 = vpop.xlane.xlu0 %854
  %v856 = vsel %vm840, %v813, 0.0
  %857 = vadd.xlane.f32.xlu0 %v856
  %v858 = vpop.xlane.xlu0 %857
  %v859 = vsel %vm840, %v814, 0.0
  %860 = vadd.xlane.f32.xlu0 %v859
  %v861 = vpop.xlane.xlu0 %860
  %v862 = vsel %vm840, %v815, 0.0
  %863 = vadd.xlane.f32.xlu0 %v862
  %v864 = vpop.xlane.xlu0 %863
  %v865 = vsel %vm840, %v816, 0.0
  %866 = vadd.xlane.f32.xlu0 %v865
  %v867 = vpop.xlane.xlu0 %866
  %v868 = vsel %vm840, %v817, 0.0
  %869 = vadd.xlane.f32.xlu0 %v868
  %v870 = vpop.xlane.xlu0 %869
  %v871 = vsel %vm840, %v818, 0.0
  %872 = vadd.xlane.f32.xlu0 %v871
  %v873 = vpop.xlane.xlu0 %872
  %v874 = vsel %vm840, %v819, 0.0
  %875 = vadd.xlane.f32.xlu0 %v874
  %v876 = vpop.xlane.xlu0 %875
  %v877 = vsel %vm840, %v820, 0.0
  %878 = vadd.xlane.f32.xlu0 %v877
  %v879 = vpop.xlane.xlu0 %878
  %v880 = vsel %vm840, %v821, 0.0
  %881 = vadd.xlane.f32.xlu0 %v880
  %v882 = vpop.xlane.xlu0 %881
  %v883 = vsel %vm840, %v822, 0.0
  %884 = vadd.xlane.f32.xlu0 %v883
  %v885 = vpop.xlane.xlu0 %884
  %v886 = vsel %vm840, %v823, 0.0
  %887 = vadd.xlane.f32.xlu0 %v886
  %v888 = vpop.xlane.xlu0 %887
  %v889 = vsel %vm840, %v824, 0.0
  %890 = vadd.xlane.f32.xlu0 %v889
  %v891 = vpop.xlane.xlu0 %890
  %v892 = vsel %vm840, %v825, 0.0
  %893 = vadd.xlane.f32.xlu0 %v892
  %v894 = vpop.xlane.xlu0 %893
  %v895 = vsel %vm840, %v826, 0.0
  %896 = vadd.xlane.f32.xlu0 %v895
  %v897 = vpop.xlane.xlu0 %896
  %v898 = vsel %vm840, %v827, 0.0
  %899 = vadd.xlane.f32.xlu0 %v898
  %v900 = vpop.xlane.xlu0 %899
  %v901 = vsel %vm840, %v828, 0.0
  %902 = vadd.xlane.f32.xlu0 %v901
  %v903 = vpop.xlane.xlu0 %902
  %v904 = vsel %vm840, %v829, 0.0
  %905 = vadd.xlane.f32.xlu0 %v904
  %v906 = vpop.xlane.xlu0 %905
  %v907 = vsel %vm840, %v830, 0.0
  %908 = vadd.xlane.f32.xlu0 %v907
  %v909 = vpop.xlane.xlu0 %908
  %v910 = vsel %vm840, %v831, 0.0
  %911 = vadd.xlane.f32.xlu0 %v910
  %v912 = vpop.xlane.xlu0 %911
  %v913 = vsel %vm840, %v832, 0.0
  %914 = vadd.xlane.f32.xlu0 %v913
  %v915 = vpop.xlane.xlu0 %914
  %v916 = vsel %vm840, %v833, 0.0
  %917 = vadd.xlane.f32.xlu0 %v916
  %v918 = vpop.xlane.xlu0 %917
  %v919 = vsel %vm840, %v834, 0.0
  %920 = vadd.xlane.f32.xlu0 %v919
  %v921 = vpop.xlane.xlu0 %920
  %v922 = vsel %vm840, %v835, 0.0
  %923 = vadd.xlane.f32.xlu0 %v922
  %v924 = vpop.xlane.xlu0 %923
  %v925 = vsel %vm840, %v836, 0.0
  %926 = vadd.xlane.f32.xlu0 %v925
  %v927 = vpop.xlane.xlu0 %926
  %v928 = vsel %vm840, %v837, 0.0
  %929 = vadd.xlane.f32.xlu0 %v928
  %v930 = vpop.xlane.xlu0 %929
  %v931 = vsel %vm840, %v838, 0.0
  %932 = vadd.xlane.f32.xlu0 %v931
  %v933 = vpop.xlane.xlu0 %932
  %v934 = vsel %vm840, %v839, 0.0
  %935 = vadd.xlane.f32.xlu0 %v934
  %v936 = vpop.xlane.xlu0 %935
  %v969 = vlaneseq
  %v970 = vand.u32 %v969, 127
  %v971 = vlaneseq
  %v972 = vshrl.u32 %v971, 7
  %v973 = vsub.s32 %v970, %v972
  %v974 = vrot.slane %v843, %v973
  %v975 = vlaneseq
  %v976 = vshrl.u32 %v975, 7
  %v977 = vsub.s32 %v970, %v976
  %v978 = vrot.slane %v846, %v977
  %v979 = vlaneseq
  %v980 = vshrl.u32 %v979, 7
  %v981 = vsub.s32 %v970, %v980
  %v982 = vrot.slane %v849, %v981
  %v983 = vlaneseq
  %v984 = vshrl.u32 %v983, 7
  %v985 = vsub.s32 %v970, %v984
  %v986 = vrot.slane %v852, %v985
  %v987 = vlaneseq
  %v988 = vshrl.u32 %v987, 7
  %v989 = vsub.s32 %v970, %v988
  %v990 = vrot.slane %v855, %v989
  %v991 = vlaneseq
  %v992 = vshrl.u32 %v991, 7
  %v993 = vsub.s32 %v970, %v992
  %v994 = vrot.slane %v858, %v993
  %v995 = vlaneseq
  %v996 = vshrl.u32 %v995, 7
  %v997 = vsub.s32 %v970, %v996
  %v998 = vrot.slane %v861, %v997
  %v999 = vlaneseq
  %v1000 = vshrl.u32 %v999, 7
  %v1001 = vsub.s32 %v970, %v1000
  %v1002 = vrot.slane %v864, %v1001
  %v1003 = vlaneseq
  %v1004 = vshrl.u32 %v1003, 7
  %v1005 = vsub.s32 %v970, %v1004
  %v1006 = vrot.slane %v867, %v1005
  %v1007 = vlaneseq
  %v1008 = vshrl.u32 %v1007, 7
  %v1009 = vsub.s32 %v970, %v1008
  %v1010 = vrot.slane %v870, %v1009
  %v1011 = vlaneseq
  %v1012 = vshrl.u32 %v1011, 7
  %v1013 = vsub.s32 %v970, %v1012
  %v1014 = vrot.slane %v873, %v1013
  %v1015 = vlaneseq
  %v1016 = vshrl.u32 %v1015, 7
  %v1017 = vsub.s32 %v970, %v1016
  %v1018 = vrot.slane %v876, %v1017
  %v1019 = vlaneseq
  %v1020 = vshrl.u32 %v1019, 7
  %v1021 = vsub.s32 %v970, %v1020
  %v1022 = vrot.slane %v879, %v1021
  %v1023 = vlaneseq
  %v1024 = vshrl.u32 %v1023, 7
  %v1025 = vsub.s32 %v970, %v1024
  %v1026 = vrot.slane %v882, %v1025
  %v1027 = vlaneseq
  %v1028 = vshrl.u32 %v1027, 7
  %v1029 = vsub.s32 %v970, %v1028
  %v1030 = vrot.slane %v885, %v1029
  %v1031 = vlaneseq
  %v1032 = vshrl.u32 %v1031, 7
  %v1033 = vsub.s32 %v970, %v1032
  %v1034 = vrot.slane %v888, %v1033
  %v1035 = vlaneseq
  %v1036 = vshrl.u32 %v1035, 7
  %v1037 = vsub.s32 %v970, %v1036
  %v1038 = vrot.slane %v891, %v1037
  %v1039 = vlaneseq
  %v1040 = vshrl.u32 %v1039, 7
  %v1041 = vsub.s32 %v970, %v1040
  %v1042 = vrot.slane %v894, %v1041
  %v1043 = vlaneseq
  %v1044 = vshrl.u32 %v1043, 7
  %v1045 = vsub.s32 %v970, %v1044
  %v1046 = vrot.slane %v897, %v1045
  %v1047 = vlaneseq
  %v1048 = vshrl.u32 %v1047, 7
  %v1049 = vsub.s32 %v970, %v1048
  %v1050 = vrot.slane %v900, %v1049
  %v1051 = vlaneseq
  %v1052 = vshrl.u32 %v1051, 7
  %v1053 = vsub.s32 %v970, %v1052
  %v1054 = vrot.slane %v903, %v1053
  %v1055 = vlaneseq
  %v1056 = vshrl.u32 %v1055, 7
  %v1057 = vsub.s32 %v970, %v1056
  %v1058 = vrot.slane %v906, %v1057
  %v1059 = vlaneseq
  %v1060 = vshrl.u32 %v1059, 7
  %v1061 = vsub.s32 %v970, %v1060
  %v1062 = vrot.slane %v909, %v1061
  %v1063 = vlaneseq
  %v1064 = vshrl.u32 %v1063, 7
  %v1065 = vsub.s32 %v970, %v1064
  %v1066 = vrot.slane %v912, %v1065
  %v1067 = vlaneseq
  %v1068 = vshrl.u32 %v1067, 7
  %v1069 = vsub.s32 %v970, %v1068
  %v1070 = vrot.slane %v915, %v1069
  %v1071 = vlaneseq
  %v1072 = vshrl.u32 %v1071, 7
  %v1073 = vsub.s32 %v970, %v1072
  %v1074 = vrot.slane %v918, %v1073
  %v1075 = vlaneseq
  %v1076 = vshrl.u32 %v1075, 7
  %v1077 = vsub.s32 %v970, %v1076
  %v1078 = vrot.slane %v921, %v1077
  %v1079 = vlaneseq
  %v1080 = vshrl.u32 %v1079, 7
  %v1081 = vsub.s32 %v970, %v1080
  %v1082 = vrot.slane %v924, %v1081
  %v1083 = vlaneseq
  %v1084 = vshrl.u32 %v1083, 7
  %v1085 = vsub.s32 %v970, %v1084
  %v1086 = vrot.slane %v927, %v1085
  %v1087 = vlaneseq
  %v1088 = vshrl.u32 %v1087, 7
  %v1089 = vsub.s32 %v970, %v1088
  %v1090 = vrot.slane %v930, %v1089
  %v1091 = vlaneseq
  %v1092 = vshrl.u32 %v1091, 7
  %v1093 = vsub.s32 %v970, %v1092
  %v1094 = vrot.slane %v933, %v1093
  %v1095 = vlaneseq
  %v1096 = vshrl.u32 %v1095, 7
  %v1097 = vsub.s32 %v970, %v1096
  %v1098 = vrot.slane %v936, %v1097
  %vm1099 = vcmask 1041409
  %v1100 = vsel %vm1099, %v978, %v974
  %vm1101 = vcmask 1042434
  %v1102 = vsel %vm1101, %v982, %v1100
  %vm1103 = vcmask 1043459
  %v1104 = vsel %vm1103, %v986, %v1102
  %vm1105 = vcmask 1044484
  %v1106 = vsel %vm1105, %v990, %v1104
  %vm1107 = vcmask 1045509
  %v1108 = vsel %vm1107, %v994, %v1106
  %vm1109 = vcmask 1046534
  %v1110 = vsel %vm1109, %v998, %v1108
  %vm1111 = vcmask 1047559
  %v1112 = vsel %vm1111, %v1002, %v1110
  %v1113 = vsel %vm1099, %v1010, %v1006
  %v1114 = vsel %vm1101, %v1014, %v1113
  %v1115 = vsel %vm1103, %v1018, %v1114
  %v1116 = vsel %vm1105, %v1022, %v1115
  %v1117 = vsel %vm1107, %v1026, %v1116
  %v1118 = vsel %vm1109, %v1030, %v1117
  %v1119 = vsel %vm1111, %v1034, %v1118
  %v1120 = vsel %vm1099, %v1042, %v1038
  %v1121 = vsel %vm1101, %v1046, %v1120
  %v1122 = vsel %vm1103, %v1050, %v1121
  %v1123 = vsel %vm1105, %v1054, %v1122
  %v1124 = vsel %vm1107, %v1058, %v1123
  %v1125 = vsel %vm1109, %v1062, %v1124
  %v1126 = vsel %vm1111, %v1066, %v1125
  %v1127 = vsel %vm1099, %v1074, %v1070
  %v1128 = vsel %vm1101, %v1078, %v1127
  %v1129 = vsel %vm1103, %v1082, %v1128
  %v1130 = vsel %vm1105, %v1086, %v1129
  %v1131 = vsel %vm1107, %v1090, %v1130
  %v1132 = vsel %vm1109, %v1094, %v1131
  %v1133 = vsel %vm1111, %v1098, %v1132
  %vm1138 = vcmask 64512
  %v1139 = vsel %vm1138, %v1112, -inf
  %1140 = vmax.xlane.f32.xlu0 %v1139
  %v1141 = vpop.xlane.xlu0 %1140
  %v1142 = vsel %vm1138, %v1119, -inf
  %1143 = vmax.xlane.f32.xlu0 %v1142
  %v1144 = vpop.xlane.xlu0 %1143
  %v1145 = vsel %vm1138, %v1126, -inf
  %1146 = vmax.xlane.f32.xlu0 %v1145
  %v1147 = vpop.xlane.xlu0 %1146
  %v1148 = vsel %vm1138, %v1133, -inf
  %1149 = vmax.xlane.f32.xlu0 %v1148
  %v1150 = vpop.xlane.xlu0 %1149
  %v1155 = vlaneseq
  %v1156 = vshrl.u32 %v1155, 7
  %v1157 = vsub.s32 0, %v1156
  %v1158 = vrot.slane %v1141, %v1157
  %v1159 = vlaneseq
  %v1160 = vshrl.u32 %v1159, 7
  %v1161 = vsub.s32 1, %v1160
  %v1162 = vrot.slane %v1141, %v1161
  %v1163 = vlaneseq
  %v1164 = vshrl.u32 %v1163, 7
  %v1165 = vsub.s32 2, %v1164
  %v1166 = vrot.slane %v1141, %v1165
  %v1167 = vlaneseq
  %v1168 = vshrl.u32 %v1167, 7
  %v1169 = vsub.s32 3, %v1168
  %v1170 = vrot.slane %v1141, %v1169
  %v1171 = vlaneseq
  %v1172 = vshrl.u32 %v1171, 7
  %v1173 = vsub.s32 4, %v1172
  %v1174 = vrot.slane %v1141, %v1173
  %v1175 = vlaneseq
  %v1176 = vshrl.u32 %v1175, 7
  %v1177 = vsub.s32 5, %v1176
  %v1178 = vrot.slane %v1141, %v1177
  %v1179 = vlaneseq
  %v1180 = vshrl.u32 %v1179, 7
  %v1181 = vsub.s32 6, %v1180
  %v1182 = vrot.slane %v1141, %v1181
  %v1183 = vlaneseq
  %v1184 = vshrl.u32 %v1183, 7
  %v1185 = vsub.s32 7, %v1184
  %v1186 = vrot.slane %v1141, %v1185
  %v1187 = vlaneseq
  %v1188 = vshrl.u32 %v1187, 7
  %v1189 = vsub.s32 0, %v1188
  %v1190 = vrot.slane %v1144, %v1189
  %v1191 = vlaneseq
  %v1192 = vshrl.u32 %v1191, 7
  %v1193 = vsub.s32 1, %v1192
  %v1194 = vrot.slane %v1144, %v1193
  %v1195 = vlaneseq
  %v1196 = vshrl.u32 %v1195, 7
  %v1197 = vsub.s32 2, %v1196
  %v1198 = vrot.slane %v1144, %v1197
  %v1199 = vlaneseq
  %v1200 = vshrl.u32 %v1199, 7
  %v1201 = vsub.s32 3, %v1200
  %v1202 = vrot.slane %v1144, %v1201
  %v1203 = vlaneseq
  %v1204 = vshrl.u32 %v1203, 7
  %v1205 = vsub.s32 4, %v1204
  %v1206 = vrot.slane %v1144, %v1205
  %v1207 = vlaneseq
  %v1208 = vshrl.u32 %v1207, 7
  %v1209 = vsub.s32 5, %v1208
  %v1210 = vrot.slane %v1144, %v1209
  %v1211 = vlaneseq
  %v1212 = vshrl.u32 %v1211, 7
  %v1213 = vsub.s32 6, %v1212
  %v1214 = vrot.slane %v1144, %v1213
  %v1215 = vlaneseq
  %v1216 = vshrl.u32 %v1215, 7
  %v1217 = vsub.s32 7, %v1216
  %v1218 = vrot.slane %v1144, %v1217
  %v1219 = vlaneseq
  %v1220 = vshrl.u32 %v1219, 7
  %v1221 = vsub.s32 0, %v1220
  %v1222 = vrot.slane %v1147, %v1221
  %v1223 = vlaneseq
  %v1224 = vshrl.u32 %v1223, 7
  %v1225 = vsub.s32 1, %v1224
  %v1226 = vrot.slane %v1147, %v1225
  %v1227 = vlaneseq
  %v1228 = vshrl.u32 %v1227, 7
  %v1229 = vsub.s32 2, %v1228
  %v1230 = vrot.slane %v1147, %v1229
  %v1231 = vlaneseq
  %v1232 = vshrl.u32 %v1231, 7
  %v1233 = vsub.s32 3, %v1232
  %v1234 = vrot.slane %v1147, %v1233
  %v1235 = vlaneseq
  %v1236 = vshrl.u32 %v1235, 7
  %v1237 = vsub.s32 4, %v1236
  %v1238 = vrot.slane %v1147, %v1237
  %v1239 = vlaneseq
  %v1240 = vshrl.u32 %v1239, 7
  %v1241 = vsub.s32 5, %v1240
  %v1242 = vrot.slane %v1147, %v1241
  %v1243 = vlaneseq
  %v1244 = vshrl.u32 %v1243, 7
  %v1245 = vsub.s32 6, %v1244
  %v1246 = vrot.slane %v1147, %v1245
  %v1247 = vlaneseq
  %v1248 = vshrl.u32 %v1247, 7
  %v1249 = vsub.s32 7, %v1248
  %v1250 = vrot.slane %v1147, %v1249
  %v1251 = vlaneseq
  %v1252 = vshrl.u32 %v1251, 7
  %v1253 = vsub.s32 0, %v1252
  %v1254 = vrot.slane %v1150, %v1253
  %v1255 = vlaneseq
  %v1256 = vshrl.u32 %v1255, 7
  %v1257 = vsub.s32 1, %v1256
  %v1258 = vrot.slane %v1150, %v1257
  %v1259 = vlaneseq
  %v1260 = vshrl.u32 %v1259, 7
  %v1261 = vsub.s32 2, %v1260
  %v1262 = vrot.slane %v1150, %v1261
  %v1263 = vlaneseq
  %v1264 = vshrl.u32 %v1263, 7
  %v1265 = vsub.s32 3, %v1264
  %v1266 = vrot.slane %v1150, %v1265
  %v1267 = vlaneseq
  %v1268 = vshrl.u32 %v1267, 7
  %v1269 = vsub.s32 4, %v1268
  %v1270 = vrot.slane %v1150, %v1269
  %v1271 = vlaneseq
  %v1272 = vshrl.u32 %v1271, 7
  %v1273 = vsub.s32 5, %v1272
  %v1274 = vrot.slane %v1150, %v1273
  %v1275 = vlaneseq
  %v1276 = vshrl.u32 %v1275, 7
  %v1277 = vsub.s32 6, %v1276
  %v1278 = vrot.slane %v1150, %v1277
  %v1279 = vlaneseq
  %v1280 = vshrl.u32 %v1279, 7
  %v1281 = vsub.s32 7, %v1280
  %v1282 = vrot.slane %v1150, %v1281
  %v1315 = vsub.f32 %v843, %v1158
  %v1316 = vsub.f32 %v846, %v1162
  %v1317 = vsub.f32 %v849, %v1166
  %v1318 = vsub.f32 %v852, %v1170
  %v1319 = vsub.f32 %v855, %v1174
  %v1320 = vsub.f32 %v858, %v1178
  %v1321 = vsub.f32 %v861, %v1182
  %v1322 = vsub.f32 %v864, %v1186
  %v1323 = vsub.f32 %v867, %v1190
  %v1324 = vsub.f32 %v870, %v1194
  %v1325 = vsub.f32 %v873, %v1198
  %v1326 = vsub.f32 %v876, %v1202
  %v1327 = vsub.f32 %v879, %v1206
  %v1328 = vsub.f32 %v882, %v1210
  %v1329 = vsub.f32 %v885, %v1214
  %v1330 = vsub.f32 %v888, %v1218
  %v1331 = vsub.f32 %v891, %v1222
  %v1332 = vsub.f32 %v894, %v1226
  %v1333 = vsub.f32 %v897, %v1230
  %v1334 = vsub.f32 %v900, %v1234
  %v1335 = vsub.f32 %v903, %v1238
  %v1336 = vsub.f32 %v906, %v1242
  %v1337 = vsub.f32 %v909, %v1246
  %v1338 = vsub.f32 %v912, %v1250
  %v1339 = vsub.f32 %v915, %v1254
  %v1340 = vsub.f32 %v918, %v1258
  %v1341 = vsub.f32 %v921, %v1262
  %v1342 = vsub.f32 %v924, %v1266
  %v1343 = vsub.f32 %v927, %v1270
  %v1344 = vsub.f32 %v930, %v1274
  %v1345 = vsub.f32 %v933, %v1278
  %v1346 = vsub.f32 %v936, %v1282
  %v1347 = vmul.f32 %v1315, 1.442695
  %v1348 = vpow.pop %v1347
  %v1349 = vmul.f32 %v1316, 1.442695
  %v1350 = vpow.pop %v1349
  %v1351 = vmul.f32 %v1317, 1.442695
  %v1352 = vpow.pop %v1351
  %v1353 = vmul.f32 %v1318, 1.442695
  %v1354 = vpow.pop %v1353
  %v1355 = vmul.f32 %v1319, 1.442695
  %v1356 = vpow.pop %v1355
  %v1357 = vmul.f32 %v1320, 1.442695
  %v1358 = vpow.pop %v1357
  %v1359 = vmul.f32 %v1321, 1.442695
  %v1360 = vpow.pop %v1359
  %v1361 = vmul.f32 %v1322, 1.442695
  %v1362 = vpow.pop %v1361
  %v1363 = vmul.f32 %v1323, 1.442695
  %v1364 = vpow.pop %v1363
  %v1365 = vmul.f32 %v1324, 1.442695
  %v1366 = vpow.pop %v1365
  %v1367 = vmul.f32 %v1325, 1.442695
  %v1368 = vpow.pop %v1367
  %v1369 = vmul.f32 %v1326, 1.442695
  %v1370 = vpow.pop %v1369
  %v1371 = vmul.f32 %v1327, 1.442695
  %v1372 = vpow.pop %v1371
  %v1373 = vmul.f32 %v1328, 1.442695
  %v1374 = vpow.pop %v1373
  %v1375 = vmul.f32 %v1329, 1.442695
  %v1376 = vpow.pop %v1375
  %v1377 = vmul.f32 %v1330, 1.442695
  %v1378 = vpow.pop %v1377
  %v1379 = vmul.f32 %v1331, 1.442695
  %v1380 = vpow.pop %v1379
  %v1381 = vmul.f32 %v1332, 1.442695
  %v1382 = vpow.pop %v1381
  %v1383 = vmul.f32 %v1333, 1.442695
  %v1384 = vpow.pop %v1383
  %v1385 = vmul.f32 %v1334, 1.442695
  %v1386 = vpow.pop %v1385
  %v1387 = vmul.f32 %v1335, 1.442695
  %v1388 = vpow.pop %v1387
  %v1389 = vmul.f32 %v1336, 1.442695
  %v1390 = vpow.pop %v1389
  %v1391 = vmul.f32 %v1337, 1.442695
  %v1392 = vpow.pop %v1391
  %v1393 = vmul.f32 %v1338, 1.442695
  %v1394 = vpow.pop %v1393
  %v1395 = vmul.f32 %v1339, 1.442695
  %v1396 = vpow.pop %v1395
  %v1397 = vmul.f32 %v1340, 1.442695
  %v1398 = vpow.pop %v1397
  %v1399 = vmul.f32 %v1341, 1.442695
  %v1400 = vpow.pop %v1399
  %v1401 = vmul.f32 %v1342, 1.442695
  %v1402 = vpow.pop %v1401
  %v1403 = vmul.f32 %v1343, 1.442695
  %v1404 = vpow.pop %v1403
  %v1405 = vmul.f32 %v1344, 1.442695
  %v1406 = vpow.pop %v1405
  %v1407 = vmul.f32 %v1345, 1.442695
  %v1408 = vpow.pop %v1407
  %v1409 = vmul.f32 %v1346, 1.442695
  %v1410 = vpow.pop %v1409
  %1443 = vset.pattern.permute.xlu0 0
  %1444 = vperm.xlu0 %1443, %v1348
  %v1445 = vpop.permute.xlu0 %1444
  %1446 = vset.pattern.permute.xlu0 0
  %1447 = vperm.xlu0 %1446, %v1350
  %v1448 = vpop.permute.xlu0 %1447
  %1449 = vset.pattern.permute.xlu0 0
  %1450 = vperm.xlu0 %1449, %v1352
  %v1451 = vpop.permute.xlu0 %1450
  %1452 = vset.pattern.permute.xlu0 0
  %1453 = vperm.xlu0 %1452, %v1354
  %v1454 = vpop.permute.xlu0 %1453
  %1455 = vset.pattern.permute.xlu0 0
  %1456 = vperm.xlu0 %1455, %v1356
  %v1457 = vpop.permute.xlu0 %1456
  %1458 = vset.pattern.permute.xlu0 0
  %1459 = vperm.xlu0 %1458, %v1358
  %v1460 = vpop.permute.xlu0 %1459
  %1461 = vset.pattern.permute.xlu0 0
  %1462 = vperm.xlu0 %1461, %v1360
  %v1463 = vpop.permute.xlu0 %1462
  %1464 = vset.pattern.permute.xlu0 0
  %1465 = vperm.xlu0 %1464, %v1362
  %v1466 = vpop.permute.xlu0 %1465
  %1467 = vset.pattern.permute.xlu0 0
  %1468 = vperm.xlu0 %1467, %v1364
  %v1469 = vpop.permute.xlu0 %1468
  %1470 = vset.pattern.permute.xlu0 0
  %1471 = vperm.xlu0 %1470, %v1366
  %v1472 = vpop.permute.xlu0 %1471
  %1473 = vset.pattern.permute.xlu0 0
  %1474 = vperm.xlu0 %1473, %v1368
  %v1475 = vpop.permute.xlu0 %1474
  %1476 = vset.pattern.permute.xlu0 0
  %1477 = vperm.xlu0 %1476, %v1370
  %v1478 = vpop.permute.xlu0 %1477
  %1479 = vset.pattern.permute.xlu0 0
  %1480 = vperm.xlu0 %1479, %v1372
  %v1481 = vpop.permute.xlu0 %1480
  %1482 = vset.pattern.permute.xlu0 0
  %1483 = vperm.xlu0 %1482, %v1374
  %v1484 = vpop.permute.xlu0 %1483
  %1485 = vset.pattern.permute.xlu0 0
  %1486 = vperm.xlu0 %1485, %v1376
  %v1487 = vpop.permute.xlu0 %1486
  %1488 = vset.pattern.permute.xlu0 0
  %1489 = vperm.xlu0 %1488, %v1378
  %v1490 = vpop.permute.xlu0 %1489
  %1491 = vset.pattern.permute.xlu0 0
  %1492 = vperm.xlu0 %1491, %v1380
  %v1493 = vpop.permute.xlu0 %1492
  %1494 = vset.pattern.permute.xlu0 0
  %1495 = vperm.xlu0 %1494, %v1382
  %v1496 = vpop.permute.xlu0 %1495
  %1497 = vset.pattern.permute.xlu0 0
  %1498 = vperm.xlu0 %1497, %v1384
  %v1499 = vpop.permute.xlu0 %1498
  %1500 = vset.pattern.permute.xlu0 0
  %1501 = vperm.xlu0 %1500, %v1386
  %v1502 = vpop.permute.xlu0 %1501
  %1503 = vset.pattern.permute.xlu0 0
  %1504 = vperm.xlu0 %1503, %v1388
  %v1505 = vpop.permute.xlu0 %1504
  %1506 = vset.pattern.permute.xlu0 0
  %1507 = vperm.xlu0 %1506, %v1390
  %v1508 = vpop.permute.xlu0 %1507
  %1509 = vset.pattern.permute.xlu0 0
  %1510 = vperm.xlu0 %1509, %v1392
  %v1511 = vpop.permute.xlu0 %1510
  %1512 = vset.pattern.permute.xlu0 0
  %1513 = vperm.xlu0 %1512, %v1394
  %v1514 = vpop.permute.xlu0 %1513
  %1515 = vset.pattern.permute.xlu0 0
  %1516 = vperm.xlu0 %1515, %v1396
  %v1517 = vpop.permute.xlu0 %1516
  %1518 = vset.pattern.permute.xlu0 0
  %1519 = vperm.xlu0 %1518, %v1398
  %v1520 = vpop.permute.xlu0 %1519
  %1521 = vset.pattern.permute.xlu0 0
  %1522 = vperm.xlu0 %1521, %v1400
  %v1523 = vpop.permute.xlu0 %1522
  %1524 = vset.pattern.permute.xlu0 0
  %1525 = vperm.xlu0 %1524, %v1402
  %v1526 = vpop.permute.xlu0 %1525
  %1527 = vset.pattern.permute.xlu0 0
  %1528 = vperm.xlu0 %1527, %v1404
  %v1529 = vpop.permute.xlu0 %1528
  %1530 = vset.pattern.permute.xlu0 0
  %1531 = vperm.xlu0 %1530, %v1406
  %v1532 = vpop.permute.xlu0 %1531
  %1533 = vset.pattern.permute.xlu0 0
  %1534 = vperm.xlu0 %1533, %v1408
  %v1535 = vpop.permute.xlu0 %1534
  %1536 = vset.pattern.permute.xlu0 0
  %1537 = vperm.xlu0 %1536, %v1410
  %v1538 = vpop.permute.xlu0 %1537
  %v1539 = vlaneseq
  %v1540 = vshrl.u32 %v1539, 7
  %v1541 = vsub.s32 %v970, %v1540
  %v1542 = vrot.slane %v1445, %v1541
  %v1543 = vlaneseq
  %v1544 = vshrl.u32 %v1543, 7
  %v1545 = vsub.s32 %v970, %v1544
  %v1546 = vrot.slane %v1448, %v1545
  %v1547 = vlaneseq
  %v1548 = vshrl.u32 %v1547, 7
  %v1549 = vsub.s32 %v970, %v1548
  %v1550 = vrot.slane %v1451, %v1549
  %v1551 = vlaneseq
  %v1552 = vshrl.u32 %v1551, 7
  %v1553 = vsub.s32 %v970, %v1552
  %v1554 = vrot.slane %v1454, %v1553
  %v1555 = vlaneseq
  %v1556 = vshrl.u32 %v1555, 7
  %v1557 = vsub.s32 %v970, %v1556
  %v1558 = vrot.slane %v1457, %v1557
  %v1559 = vlaneseq
  %v1560 = vshrl.u32 %v1559, 7
  %v1561 = vsub.s32 %v970, %v1560
  %v1562 = vrot.slane %v1460, %v1561
  %v1563 = vlaneseq
  %v1564 = vshrl.u32 %v1563, 7
  %v1565 = vsub.s32 %v970, %v1564
  %v1566 = vrot.slane %v1463, %v1565
  %v1567 = vlaneseq
  %v1568 = vshrl.u32 %v1567, 7
  %v1569 = vsub.s32 %v970, %v1568
  %v1570 = vrot.slane %v1466, %v1569
  %v1571 = vlaneseq
  %v1572 = vshrl.u32 %v1571, 7
  %v1573 = vsub.s32 %v970, %v1572
  %v1574 = vrot.slane %v1469, %v1573
  %v1575 = vlaneseq
  %v1576 = vshrl.u32 %v1575, 7
  %v1577 = vsub.s32 %v970, %v1576
  %v1578 = vrot.slane %v1472, %v1577
  %v1579 = vlaneseq
  %v1580 = vshrl.u32 %v1579, 7
  %v1581 = vsub.s32 %v970, %v1580
  %v1582 = vrot.slane %v1475, %v1581
  %v1583 = vlaneseq
  %v1584 = vshrl.u32 %v1583, 7
  %v1585 = vsub.s32 %v970, %v1584
  %v1586 = vrot.slane %v1478, %v1585
  %v1587 = vlaneseq
  %v1588 = vshrl.u32 %v1587, 7
  %v1589 = vsub.s32 %v970, %v1588
  %v1590 = vrot.slane %v1481, %v1589
  %v1591 = vlaneseq
  %v1592 = vshrl.u32 %v1591, 7
  %v1593 = vsub.s32 %v970, %v1592
  %v1594 = vrot.slane %v1484, %v1593
  %v1595 = vlaneseq
  %v1596 = vshrl.u32 %v1595, 7
  %v1597 = vsub.s32 %v970, %v1596
  %v1598 = vrot.slane %v1487, %v1597
  %v1599 = vlaneseq
  %v1600 = vshrl.u32 %v1599, 7
  %v1601 = vsub.s32 %v970, %v1600
  %v1602 = vrot.slane %v1490, %v1601
  %v1603 = vlaneseq
  %v1604 = vshrl.u32 %v1603, 7
  %v1605 = vsub.s32 %v970, %v1604
  %v1606 = vrot.slane %v1493, %v1605
  %v1607 = vlaneseq
  %v1608 = vshrl.u32 %v1607, 7
  %v1609 = vsub.s32 %v970, %v1608
  %v1610 = vrot.slane %v1496, %v1609
  %v1611 = vlaneseq
  %v1612 = vshrl.u32 %v1611, 7
  %v1613 = vsub.s32 %v970, %v1612
  %v1614 = vrot.slane %v1499, %v1613
  %v1615 = vlaneseq
  %v1616 = vshrl.u32 %v1615, 7
  %v1617 = vsub.s32 %v970, %v1616
  %v1618 = vrot.slane %v1502, %v1617
  %v1619 = vlaneseq
  %v1620 = vshrl.u32 %v1619, 7
  %v1621 = vsub.s32 %v970, %v1620
  %v1622 = vrot.slane %v1505, %v1621
  %v1623 = vlaneseq
  %v1624 = vshrl.u32 %v1623, 7
  %v1625 = vsub.s32 %v970, %v1624
  %v1626 = vrot.slane %v1508, %v1625
  %v1627 = vlaneseq
  %v1628 = vshrl.u32 %v1627, 7
  %v1629 = vsub.s32 %v970, %v1628
  %v1630 = vrot.slane %v1511, %v1629
  %v1631 = vlaneseq
  %v1632 = vshrl.u32 %v1631, 7
  %v1633 = vsub.s32 %v970, %v1632
  %v1634 = vrot.slane %v1514, %v1633
  %v1635 = vlaneseq
  %v1636 = vshrl.u32 %v1635, 7
  %v1637 = vsub.s32 %v970, %v1636
  %v1638 = vrot.slane %v1517, %v1637
  %v1639 = vlaneseq
  %v1640 = vshrl.u32 %v1639, 7
  %v1641 = vsub.s32 %v970, %v1640
  %v1642 = vrot.slane %v1520, %v1641
  %v1643 = vlaneseq
  %v1644 = vshrl.u32 %v1643, 7
  %v1645 = vsub.s32 %v970, %v1644
  %v1646 = vrot.slane %v1523, %v1645
  %v1647 = vlaneseq
  %v1648 = vshrl.u32 %v1647, 7
  %v1649 = vsub.s32 %v970, %v1648
  %v1650 = vrot.slane %v1526, %v1649
  %v1651 = vlaneseq
  %v1652 = vshrl.u32 %v1651, 7
  %v1653 = vsub.s32 %v970, %v1652
  %v1654 = vrot.slane %v1529, %v1653
  %v1655 = vlaneseq
  %v1656 = vshrl.u32 %v1655, 7
  %v1657 = vsub.s32 %v970, %v1656
  %v1658 = vrot.slane %v1532, %v1657
  %v1659 = vlaneseq
  %v1660 = vshrl.u32 %v1659, 7
  %v1661 = vsub.s32 %v970, %v1660
  %v1662 = vrot.slane %v1535, %v1661
  %v1663 = vlaneseq
  %v1664 = vshrl.u32 %v1663, 7
  %v1665 = vsub.s32 %v970, %v1664
  %v1666 = vrot.slane %v1538, %v1665
  %v1667 = vsel %vm1099, %v1546, %v1542
  %v1668 = vsel %vm1101, %v1550, %v1667
  %v1669 = vsel %vm1103, %v1554, %v1668
  %v1670 = vsel %vm1105, %v1558, %v1669
  %v1671 = vsel %vm1107, %v1562, %v1670
  %v1672 = vsel %vm1109, %v1566, %v1671
  %v1673 = vsel %vm1111, %v1570, %v1672
  %v1674 = vsel %vm1099, %v1578, %v1574
  %v1675 = vsel %vm1101, %v1582, %v1674
  %v1676 = vsel %vm1103, %v1586, %v1675
  %v1677 = vsel %vm1105, %v1590, %v1676
  %v1678 = vsel %vm1107, %v1594, %v1677
  %v1679 = vsel %vm1109, %v1598, %v1678
  %v1680 = vsel %vm1111, %v1602, %v1679
  %v1681 = vsel %vm1099, %v1610, %v1606
  %v1682 = vsel %vm1101, %v1614, %v1681
  %v1683 = vsel %vm1103, %v1618, %v1682
  %v1684 = vsel %vm1105, %v1622, %v1683
  %v1685 = vsel %vm1107, %v1626, %v1684
  %v1686 = vsel %vm1109, %v1630, %v1685
  %v1687 = vsel %vm1111, %v1634, %v1686
  %v1688 = vsel %vm1099, %v1642, %v1638
  %v1689 = vsel %vm1101, %v1646, %v1688
  %v1690 = vsel %vm1103, %v1650, %v1689
  %v1691 = vsel %vm1105, %v1654, %v1690
  %v1692 = vsel %vm1107, %v1658, %v1691
  %v1693 = vsel %vm1109, %v1662, %v1692
  %v1694 = vsel %vm1111, %v1666, %v1693
  %v1699 = vsel %vm1138, %v1673, 0.0
  %1700 = vadd.xlane.f32.xlu0 %v1699
  %v1701 = vpop.xlane.xlu0 %1700
  %v1702 = vsel %vm1138, %v1680, 0.0
  %1703 = vadd.xlane.f32.xlu0 %v1702
  %v1704 = vpop.xlane.xlu0 %1703
  %v1705 = vsel %vm1138, %v1687, 0.0
  %1706 = vadd.xlane.f32.xlu0 %v1705
  %v1707 = vpop.xlane.xlu0 %1706
  %v1708 = vsel %vm1138, %v1694, 0.0
  %1709 = vadd.xlane.f32.xlu0 %v1708
  %v1710 = vpop.xlane.xlu0 %1709
  %v1711 = vrcp.pop %v1701
  %v1712 = vrcp.pop %v1704
  %v1713 = vrcp.pop %v1707
  %v1714 = vrcp.pop %v1710
  %v1715 = vmul.f32 %v1701, %v1711
  %v1716 = vmul.f32 %v1704, %v1712
  %v1717 = vmul.f32 %v1707, %v1713
  %v1718 = vmul.f32 %v1710, %v1714
  %v1719 = vsub.f32 2.0, %v1715
  %v1720 = vsub.f32 2.0, %v1716
  %v1721 = vsub.f32 2.0, %v1717
  %v1722 = vsub.f32 2.0, %v1718
  %v1723 = vmul.f32 %v1711, %v1719
  %v1724 = vmul.f32 %v1712, %v1720
  %v1725 = vmul.f32 %v1713, %v1721
  %v1726 = vmul.f32 %v1714, %v1722
  %v1731 = vlaneseq
  %v1732 = vshrl.u32 %v1731, 7
  %v1733 = vsub.s32 0, %v1732
  %v1734 = vrot.slane %v1723, %v1733
  %v1735 = vlaneseq
  %v1736 = vshrl.u32 %v1735, 7
  %v1737 = vsub.s32 1, %v1736
  %v1738 = vrot.slane %v1723, %v1737
  %v1739 = vlaneseq
  %v1740 = vshrl.u32 %v1739, 7
  %v1741 = vsub.s32 2, %v1740
  %v1742 = vrot.slane %v1723, %v1741
  %v1743 = vlaneseq
  %v1744 = vshrl.u32 %v1743, 7
  %v1745 = vsub.s32 3, %v1744
  %v1746 = vrot.slane %v1723, %v1745
  %v1747 = vlaneseq
  %v1748 = vshrl.u32 %v1747, 7
  %v1749 = vsub.s32 4, %v1748
  %v1750 = vrot.slane %v1723, %v1749
  %v1751 = vlaneseq
  %v1752 = vshrl.u32 %v1751, 7
  %v1753 = vsub.s32 5, %v1752
  %v1754 = vrot.slane %v1723, %v1753
  %v1755 = vlaneseq
  %v1756 = vshrl.u32 %v1755, 7
  %v1757 = vsub.s32 6, %v1756
  %v1758 = vrot.slane %v1723, %v1757
  %v1759 = vlaneseq
  %v1760 = vshrl.u32 %v1759, 7
  %v1761 = vsub.s32 7, %v1760
  %v1762 = vrot.slane %v1723, %v1761
  %v1763 = vlaneseq
  %v1764 = vshrl.u32 %v1763, 7
  %v1765 = vsub.s32 0, %v1764
  %v1766 = vrot.slane %v1724, %v1765
  %v1767 = vlaneseq
  %v1768 = vshrl.u32 %v1767, 7
  %v1769 = vsub.s32 1, %v1768
  %v1770 = vrot.slane %v1724, %v1769
  %v1771 = vlaneseq
  %v1772 = vshrl.u32 %v1771, 7
  %v1773 = vsub.s32 2, %v1772
  %v1774 = vrot.slane %v1724, %v1773
  %v1775 = vlaneseq
  %v1776 = vshrl.u32 %v1775, 7
  %v1777 = vsub.s32 3, %v1776
  %v1778 = vrot.slane %v1724, %v1777
  %v1779 = vlaneseq
  %v1780 = vshrl.u32 %v1779, 7
  %v1781 = vsub.s32 4, %v1780
  %v1782 = vrot.slane %v1724, %v1781
  %v1783 = vlaneseq
  %v1784 = vshrl.u32 %v1783, 7
  %v1785 = vsub.s32 5, %v1784
  %v1786 = vrot.slane %v1724, %v1785
  %v1787 = vlaneseq
  %v1788 = vshrl.u32 %v1787, 7
  %v1789 = vsub.s32 6, %v1788
  %v1790 = vrot.slane %v1724, %v1789
  %v1791 = vlaneseq
  %v1792 = vshrl.u32 %v1791, 7
  %v1793 = vsub.s32 7, %v1792
  %v1794 = vrot.slane %v1724, %v1793
  %v1795 = vlaneseq
  %v1796 = vshrl.u32 %v1795, 7
  %v1797 = vsub.s32 0, %v1796
  %v1798 = vrot.slane %v1725, %v1797
  %v1799 = vlaneseq
  %v1800 = vshrl.u32 %v1799, 7
  %v1801 = vsub.s32 1, %v1800
  %v1802 = vrot.slane %v1725, %v1801
  %v1803 = vlaneseq
  %v1804 = vshrl.u32 %v1803, 7
  %v1805 = vsub.s32 2, %v1804
  %v1806 = vrot.slane %v1725, %v1805
  %v1807 = vlaneseq
  %v1808 = vshrl.u32 %v1807, 7
  %v1809 = vsub.s32 3, %v1808
  %v1810 = vrot.slane %v1725, %v1809
  %v1811 = vlaneseq
  %v1812 = vshrl.u32 %v1811, 7
  %v1813 = vsub.s32 4, %v1812
  %v1814 = vrot.slane %v1725, %v1813
  %v1815 = vlaneseq
  %v1816 = vshrl.u32 %v1815, 7
  %v1817 = vsub.s32 5, %v1816
  %v1818 = vrot.slane %v1725, %v1817
  %v1819 = vlaneseq
  %v1820 = vshrl.u32 %v1819, 7
  %v1821 = vsub.s32 6, %v1820
  %v1822 = vrot.slane %v1725, %v1821
  %v1823 = vlaneseq
  %v1824 = vshrl.u32 %v1823, 7
  %v1825 = vsub.s32 7, %v1824
  %v1826 = vrot.slane %v1725, %v1825
  %v1827 = vlaneseq
  %v1828 = vshrl.u32 %v1827, 7
  %v1829 = vsub.s32 0, %v1828
  %v1830 = vrot.slane %v1726, %v1829
  %v1831 = vlaneseq
  %v1832 = vshrl.u32 %v1831, 7
  %v1833 = vsub.s32 1, %v1832
  %v1834 = vrot.slane %v1726, %v1833
  %v1835 = vlaneseq
  %v1836 = vshrl.u32 %v1835, 7
  %v1837 = vsub.s32 2, %v1836
  %v1838 = vrot.slane %v1726, %v1837
  %v1839 = vlaneseq
  %v1840 = vshrl.u32 %v1839, 7
  %v1841 = vsub.s32 3, %v1840
  %v1842 = vrot.slane %v1726, %v1841
  %v1843 = vlaneseq
  %v1844 = vshrl.u32 %v1843, 7
  %v1845 = vsub.s32 4, %v1844
  %v1846 = vrot.slane %v1726, %v1845
  %v1847 = vlaneseq
  %v1848 = vshrl.u32 %v1847, 7
  %v1849 = vsub.s32 5, %v1848
  %v1850 = vrot.slane %v1726, %v1849
  %v1851 = vlaneseq
  %v1852 = vshrl.u32 %v1851, 7
  %v1853 = vsub.s32 6, %v1852
  %v1854 = vrot.slane %v1726, %v1853
  %v1855 = vlaneseq
  %v1856 = vshrl.u32 %v1855, 7
  %v1857 = vsub.s32 7, %v1856
  %v1858 = vrot.slane %v1726, %v1857
  %v1891 = vmul.f32 %v1348, %v1734
  %v1892 = vmul.f32 %v1350, %v1738
  %v1893 = vmul.f32 %v1352, %v1742
  %v1894 = vmul.f32 %v1354, %v1746
  %v1895 = vmul.f32 %v1356, %v1750
  %v1896 = vmul.f32 %v1358, %v1754
  %v1897 = vmul.f32 %v1360, %v1758
  %v1898 = vmul.f32 %v1362, %v1762
  %v1899 = vmul.f32 %v1364, %v1766
  %v1900 = vmul.f32 %v1366, %v1770
  %v1901 = vmul.f32 %v1368, %v1774
  %v1902 = vmul.f32 %v1370, %v1778
  %v1903 = vmul.f32 %v1372, %v1782
  %v1904 = vmul.f32 %v1374, %v1786
  %v1905 = vmul.f32 %v1376, %v1790
  %v1906 = vmul.f32 %v1378, %v1794
  %v1907 = vmul.f32 %v1380, %v1798
  %v1908 = vmul.f32 %v1382, %v1802
  %v1909 = vmul.f32 %v1384, %v1806
  %v1910 = vmul.f32 %v1386, %v1810
  %v1911 = vmul.f32 %v1388, %v1814
  %v1912 = vmul.f32 %v1390, %v1818
  %v1913 = vmul.f32 %v1392, %v1822
  %v1914 = vmul.f32 %v1394, %v1826
  %v1915 = vmul.f32 %v1396, %v1830
  %v1916 = vmul.f32 %v1398, %v1834
  %v1917 = vmul.f32 %v1400, %v1838
  %v1918 = vmul.f32 %v1402, %v1842
  %v1919 = vmul.f32 %v1404, %v1846
  %v1920 = vmul.f32 %v1406, %v1850
  %v1921 = vmul.f32 %v1408, %v1854
  %v1922 = vmul.f32 %v1410, %v1858
  %1955 = vset.pattern.permute.xlu0 0
  %1956 = vperm.xlu0 %1955, %v1891
  %v1957 = vpop.permute.xlu0 %1956
  %1958 = vset.pattern.permute.xlu0 0
  %1959 = vperm.xlu0 %1958, %v1892
  %v1960 = vpop.permute.xlu0 %1959
  %1961 = vset.pattern.permute.xlu0 0
  %1962 = vperm.xlu0 %1961, %v1893
  %v1963 = vpop.permute.xlu0 %1962
  %1964 = vset.pattern.permute.xlu0 0
  %1965 = vperm.xlu0 %1964, %v1894
  %v1966 = vpop.permute.xlu0 %1965
  %1967 = vset.pattern.permute.xlu0 0
  %1968 = vperm.xlu0 %1967, %v1895
  %v1969 = vpop.permute.xlu0 %1968
  %1970 = vset.pattern.permute.xlu0 0
  %1971 = vperm.xlu0 %1970, %v1896
  %v1972 = vpop.permute.xlu0 %1971
  %1973 = vset.pattern.permute.xlu0 0
  %1974 = vperm.xlu0 %1973, %v1897
  %v1975 = vpop.permute.xlu0 %1974
  %1976 = vset.pattern.permute.xlu0 0
  %1977 = vperm.xlu0 %1976, %v1898
  %v1978 = vpop.permute.xlu0 %1977
  %1979 = vset.pattern.permute.xlu0 0
  %1980 = vperm.xlu0 %1979, %v1899
  %v1981 = vpop.permute.xlu0 %1980
  %1982 = vset.pattern.permute.xlu0 0
  %1983 = vperm.xlu0 %1982, %v1900
  %v1984 = vpop.permute.xlu0 %1983
  %1985 = vset.pattern.permute.xlu0 0
  %1986 = vperm.xlu0 %1985, %v1901
  %v1987 = vpop.permute.xlu0 %1986
  %1988 = vset.pattern.permute.xlu0 0
  %1989 = vperm.xlu0 %1988, %v1902
  %v1990 = vpop.permute.xlu0 %1989
  %1991 = vset.pattern.permute.xlu0 0
  %1992 = vperm.xlu0 %1991, %v1903
  %v1993 = vpop.permute.xlu0 %1992
  %1994 = vset.pattern.permute.xlu0 0
  %1995 = vperm.xlu0 %1994, %v1904
  %v1996 = vpop.permute.xlu0 %1995
  %1997 = vset.pattern.permute.xlu0 0
  %1998 = vperm.xlu0 %1997, %v1905
  %v1999 = vpop.permute.xlu0 %1998
  %2000 = vset.pattern.permute.xlu0 0
  %2001 = vperm.xlu0 %2000, %v1906
  %v2002 = vpop.permute.xlu0 %2001
  %2003 = vset.pattern.permute.xlu0 0
  %2004 = vperm.xlu0 %2003, %v1907
  %v2005 = vpop.permute.xlu0 %2004
  %2006 = vset.pattern.permute.xlu0 0
  %2007 = vperm.xlu0 %2006, %v1908
  %v2008 = vpop.permute.xlu0 %2007
  %2009 = vset.pattern.permute.xlu0 0
  %2010 = vperm.xlu0 %2009, %v1909
  %v2011 = vpop.permute.xlu0 %2010
  %2012 = vset.pattern.permute.xlu0 0
  %2013 = vperm.xlu0 %2012, %v1910
  %v2014 = vpop.permute.xlu0 %2013
  %2015 = vset.pattern.permute.xlu0 0
  %2016 = vperm.xlu0 %2015, %v1911
  %v2017 = vpop.permute.xlu0 %2016
  %2018 = vset.pattern.permute.xlu0 0
  %2019 = vperm.xlu0 %2018, %v1912
  %v2020 = vpop.permute.xlu0 %2019
  %2021 = vset.pattern.permute.xlu0 0
  %2022 = vperm.xlu0 %2021, %v1913
  %v2023 = vpop.permute.xlu0 %2022
  %2024 = vset.pattern.permute.xlu0 0
  %2025 = vperm.xlu0 %2024, %v1914
  %v2026 = vpop.permute.xlu0 %2025
  %2027 = vset.pattern.permute.xlu0 0
  %2028 = vperm.xlu0 %2027, %v1915
  %v2029 = vpop.permute.xlu0 %2028
  %2030 = vset.pattern.permute.xlu0 0
  %2031 = vperm.xlu0 %2030, %v1916
  %v2032 = vpop.permute.xlu0 %2031
  %2033 = vset.pattern.permute.xlu0 0
  %2034 = vperm.xlu0 %2033, %v1917
  %v2035 = vpop.permute.xlu0 %2034
  %2036 = vset.pattern.permute.xlu0 0
  %2037 = vperm.xlu0 %2036, %v1918
  %v2038 = vpop.permute.xlu0 %2037
  %2039 = vset.pattern.permute.xlu0 0
  %2040 = vperm.xlu0 %2039, %v1919
  %v2041 = vpop.permute.xlu0 %2040
  %2042 = vset.pattern.permute.xlu0 0
  %2043 = vperm.xlu0 %2042, %v1920
  %v2044 = vpop.permute.xlu0 %2043
  %2045 = vset.pattern.permute.xlu0 0
  %2046 = vperm.xlu0 %2045, %v1921
  %v2047 = vpop.permute.xlu0 %2046
  %2048 = vset.pattern.permute.xlu0 0
  %2049 = vperm.xlu0 %2048, %v1922
  %v2050 = vpop.permute.xlu0 %2049
  %v2051 = vlaneseq
  %v2052 = vshrl.u32 %v2051, 7
  %v2053 = vsub.s32 %v970, %v2052
  %v2054 = vrot.slane %v1957, %v2053
  %v2055 = vlaneseq
  %v2056 = vshrl.u32 %v2055, 7
  %v2057 = vsub.s32 %v970, %v2056
  %v2058 = vrot.slane %v1960, %v2057
  %v2059 = vlaneseq
  %v2060 = vshrl.u32 %v2059, 7
  %v2061 = vsub.s32 %v970, %v2060
  %v2062 = vrot.slane %v1963, %v2061
  %v2063 = vlaneseq
  %v2064 = vshrl.u32 %v2063, 7
  %v2065 = vsub.s32 %v970, %v2064
  %v2066 = vrot.slane %v1966, %v2065
  %v2067 = vlaneseq
  %v2068 = vshrl.u32 %v2067, 7
  %v2069 = vsub.s32 %v970, %v2068
  %v2070 = vrot.slane %v1969, %v2069
  %v2071 = vlaneseq
  %v2072 = vshrl.u32 %v2071, 7
  %v2073 = vsub.s32 %v970, %v2072
  %v2074 = vrot.slane %v1972, %v2073
  %v2075 = vlaneseq
  %v2076 = vshrl.u32 %v2075, 7
  %v2077 = vsub.s32 %v970, %v2076
  %v2078 = vrot.slane %v1975, %v2077
  %v2079 = vlaneseq
  %v2080 = vshrl.u32 %v2079, 7
  %v2081 = vsub.s32 %v970, %v2080
  %v2082 = vrot.slane %v1978, %v2081
  %v2083 = vlaneseq
  %v2084 = vshrl.u32 %v2083, 7
  %v2085 = vsub.s32 %v970, %v2084
  %v2086 = vrot.slane %v1981, %v2085
  %v2087 = vlaneseq
  %v2088 = vshrl.u32 %v2087, 7
  %v2089 = vsub.s32 %v970, %v2088
  %v2090 = vrot.slane %v1984, %v2089
  %v2091 = vlaneseq
  %v2092 = vshrl.u32 %v2091, 7
  %v2093 = vsub.s32 %v970, %v2092
  %v2094 = vrot.slane %v1987, %v2093
  %v2095 = vlaneseq
  %v2096 = vshrl.u32 %v2095, 7
  %v2097 = vsub.s32 %v970, %v2096
  %v2098 = vrot.slane %v1990, %v2097
  %v2099 = vlaneseq
  %v2100 = vshrl.u32 %v2099, 7
  %v2101 = vsub.s32 %v970, %v2100
  %v2102 = vrot.slane %v1993, %v2101
  %v2103 = vlaneseq
  %v2104 = vshrl.u32 %v2103, 7
  %v2105 = vsub.s32 %v970, %v2104
  %v2106 = vrot.slane %v1996, %v2105
  %v2107 = vlaneseq
  %v2108 = vshrl.u32 %v2107, 7
  %v2109 = vsub.s32 %v970, %v2108
  %v2110 = vrot.slane %v1999, %v2109
  %v2111 = vlaneseq
  %v2112 = vshrl.u32 %v2111, 7
  %v2113 = vsub.s32 %v970, %v2112
  %v2114 = vrot.slane %v2002, %v2113
  %v2115 = vlaneseq
  %v2116 = vshrl.u32 %v2115, 7
  %v2117 = vsub.s32 %v970, %v2116
  %v2118 = vrot.slane %v2005, %v2117
  %v2119 = vlaneseq
  %v2120 = vshrl.u32 %v2119, 7
  %v2121 = vsub.s32 %v970, %v2120
  %v2122 = vrot.slane %v2008, %v2121
  %v2123 = vlaneseq
  %v2124 = vshrl.u32 %v2123, 7
  %v2125 = vsub.s32 %v970, %v2124
  %v2126 = vrot.slane %v2011, %v2125
  %v2127 = vlaneseq
  %v2128 = vshrl.u32 %v2127, 7
  %v2129 = vsub.s32 %v970, %v2128
  %v2130 = vrot.slane %v2014, %v2129
  %v2131 = vlaneseq
  %v2132 = vshrl.u32 %v2131, 7
  %v2133 = vsub.s32 %v970, %v2132
  %v2134 = vrot.slane %v2017, %v2133
  %v2135 = vlaneseq
  %v2136 = vshrl.u32 %v2135, 7
  %v2137 = vsub.s32 %v970, %v2136
  %v2138 = vrot.slane %v2020, %v2137
  %v2139 = vlaneseq
  %v2140 = vshrl.u32 %v2139, 7
  %v2141 = vsub.s32 %v970, %v2140
  %v2142 = vrot.slane %v2023, %v2141
  %v2143 = vlaneseq
  %v2144 = vshrl.u32 %v2143, 7
  %v2145 = vsub.s32 %v970, %v2144
  %v2146 = vrot.slane %v2026, %v2145
  %v2147 = vlaneseq
  %v2148 = vshrl.u32 %v2147, 7
  %v2149 = vsub.s32 %v970, %v2148
  %v2150 = vrot.slane %v2029, %v2149
  %v2151 = vlaneseq
  %v2152 = vshrl.u32 %v2151, 7
  %v2153 = vsub.s32 %v970, %v2152
  %v2154 = vrot.slane %v2032, %v2153
  %v2155 = vlaneseq
  %v2156 = vshrl.u32 %v2155, 7
  %v2157 = vsub.s32 %v970, %v2156
  %v2158 = vrot.slane %v2035, %v2157
  %v2159 = vlaneseq
  %v2160 = vshrl.u32 %v2159, 7
  %v2161 = vsub.s32 %v970, %v2160
  %v2162 = vrot.slane %v2038, %v2161
  %v2163 = vlaneseq
  %v2164 = vshrl.u32 %v2163, 7
  %v2165 = vsub.s32 %v970, %v2164
  %v2166 = vrot.slane %v2041, %v2165
  %v2167 = vlaneseq
  %v2168 = vshrl.u32 %v2167, 7
  %v2169 = vsub.s32 %v970, %v2168
  %v2170 = vrot.slane %v2044, %v2169
  %v2171 = vlaneseq
  %v2172 = vshrl.u32 %v2171, 7
  %v2173 = vsub.s32 %v970, %v2172
  %v2174 = vrot.slane %v2047, %v2173
  %v2175 = vlaneseq
  %v2176 = vshrl.u32 %v2175, 7
  %v2177 = vsub.s32 %v970, %v2176
  %v2178 = vrot.slane %v2050, %v2177
  %v2179 = vsel %vm1099, %v2058, %v2054
  %v2180 = vsel %vm1101, %v2062, %v2179
  %v2181 = vsel %vm1103, %v2066, %v2180
  %v2182 = vsel %vm1105, %v2070, %v2181
  %v2183 = vsel %vm1107, %v2074, %v2182
  %v2184 = vsel %vm1109, %v2078, %v2183
  %v2185 = vsel %vm1111, %v2082, %v2184
  %v2186 = vsel %vm1099, %v2090, %v2086
  %v2187 = vsel %vm1101, %v2094, %v2186
  %v2188 = vsel %vm1103, %v2098, %v2187
  %v2189 = vsel %vm1105, %v2102, %v2188
  %v2190 = vsel %vm1107, %v2106, %v2189
  %v2191 = vsel %vm1109, %v2110, %v2190
  %v2192 = vsel %vm1111, %v2114, %v2191
  %v2193 = vsel %vm1099, %v2122, %v2118
  %v2194 = vsel %vm1101, %v2126, %v2193
  %v2195 = vsel %vm1103, %v2130, %v2194
  %v2196 = vsel %vm1105, %v2134, %v2195
  %v2197 = vsel %vm1107, %v2138, %v2196
  %v2198 = vsel %vm1109, %v2142, %v2197
  %v2199 = vsel %vm1111, %v2146, %v2198
  %v2200 = vsel %vm1099, %v2154, %v2150
  %v2201 = vsel %vm1101, %v2158, %v2200
  %v2202 = vsel %vm1103, %v2162, %v2201
  %v2203 = vsel %vm1105, %v2166, %v2202
  %v2204 = vsel %vm1107, %v2170, %v2203
  %v2205 = vsel %vm1109, %v2174, %v2204
  %v2206 = vsel %vm1111, %v2178, %v2205
  %2211 = vst.msk [vmem:[%s4] sm:$0xff] %vm1138, %v2185
  %2212 = vst.msk [vmem:[%s4 + $0x8] sm:$0xff] %vm1138, %v2192
  %2213 = vst.msk [vmem:[%s4 + $0x10] sm:$0xff] %vm1138, %v2199
  %2214 = vst.msk [vmem:[%s4 + $0x18] sm:$0xff] %vm1138, %v2206
  // Predicated region
  $region18: #{tpu_custom_call.1} parent=0 // pred_check
    _
  $region19: #{tpu_custom_call.1} parent=0 // pred_check_branch
    %2216 = sbr.rel (0) target = $region21
  $region20: #{tpu_custom_call.1} parent=0 // pred_region
    _
  $region21: #{tpu_custom_call.1} parent=0 // pred_fallthru
    _
  // Predicated region
  $region22: #{tpu_custom_call.1} parent=0 // pred_check
    _
  $region23: #{tpu_custom_call.1} parent=0 // pred_check_branch
    %2218 = sbr.rel (0) target = $region25
  $region24: #{tpu_custom_call.1} parent=0 // pred_region
    _
  $region25: #{tpu_custom_call.1} parent=0 // pred_fallthru
    _

</llo_original>
